<compile_context>
chip_gen: v7x
topology: tpu7x:2x2x1
jax: 0.10.0
libtpu: 0.0.40
codegen_flags: <defaults>
</compile_context>

<pallas_src>
import functools

import jax
import jax.numpy as jnp
from jax.experimental import pallas as pl
from jax.experimental.pallas import tpu as pltpu

EPS = 1e-8  # same epsilon convention as cs285 infrastructure.utils.normalize


def _make_ff_kernel(num_extra_hidden):
    """Build a kernel for an MLP with (1 + num_extra_hidden) tanh hidden layers."""

    def kernel(
        obs_ref, acs_ref,
        obs_mean_ref, obs_std_ref,
        acs_mean_ref, acs_std_ref,
        delta_mean_ref, delta_std_ref,
        w1_obs_ref, w1_acs_ref, b1_ref,
        *rest,
    ):
        # rest = [w_h, b_h]*num_extra_hidden + [w_out, b_out, next_obs_ref, delta_norm_ref]
        hidden_refs = rest[: 2 * num_extra_hidden]
        w_out_ref, b_out_ref = rest[2 * num_extra_hidden: 2 * num_extra_hidden + 2]
        next_obs_ref, delta_norm_ref = rest[-2:]

        f32 = jnp.float32
        obs = obs_ref[...].astype(f32)
        acs = acs_ref[...].astype(f32)

        # normalize(x, mean, std) = (x - mean) / (std + eps).
        # The divide runs once per (1, width) stat row (cheap); the full
        # (TM, width) tile only sees a VALU multiply, keeping EUP free for tanh.
        inv_obs_std = 1.0 / (obs_std_ref[...].astype(f32) + EPS)
        inv_acs_std = 1.0 / (acs_std_ref[...].astype(f32) + EPS)
        obs_n = (obs - obs_mean_ref[...].astype(f32)) * inv_obs_std
        acs_n = (acs - acs_mean_ref[...].astype(f32)) * inv_acs_std

        # Layer 1: concat([obs_n, acs_n]) @ W1 + b1, Tanh.
        # Implemented as two dots to avoid an in-kernel lane concat.
        h = jnp.dot(obs_n, w1_obs_ref[...], preferred_element_type=f32)
        h = h + jnp.dot(acs_n, w1_acs_ref[...], preferred_element_type=f32)
        h = jnp.tanh(h + b1_ref[...].astype(f32))

        # Remaining hidden layers (statically unrolled at trace time): Linear + Tanh.
        for l in range(num_extra_hidden):
            w_ref = hidden_refs[2 * l]
            b_ref = hidden_refs[2 * l + 1]
            h = jnp.tanh(
                jnp.dot(h, w_ref[...], preferred_element_type=f32)
                + b_ref[...].astype(f32)
            )

        # Output layer (identity activation) -> normalized delta prediction.
        delta_norm = (
            jnp.dot(h, w_out_ref[...], preferred_element_type=f32)
            + b_out_ref[...].astype(f32)
        )
        delta_norm_ref[...] = delta_norm.astype(delta_norm_ref.dtype)

        # unnormalize(delta, mean, std) = delta * std + mean ; next_obs = obs + that.
        next_obs = (
            obs
            + delta_norm * delta_std_ref[...].astype(f32)
            + delta_mean_ref[...].astype(f32)
        )
        next_obs_ref[...] = next_obs.astype(next_obs_ref.dtype)

    return kernel


def _choose_pack_factor(n, ob_dim, ac_dim, size, n_layers):
    """Largest G in {8,4,2,1} giving lane-dense packed arrays within budget."""
    in_dim = ob_dim + ac_dim
    for g in (8, 4, 2, 1):
        if n % g:
            continue
        if g * max(size, in_dim, ob_dim) > 512:      # keep packed widths modest
            continue
        # Resident packed-weight footprint (f32, x2 for conservative buffering).
        w_elems = (g * in_dim) * (g * size)
        w_elems += (n_layers - 1) * (g * size) * (g * size)
        w_elems += (g * size) * (g * ob_dim)
        if 2 * 4 * w_elems > 16 * 1024 * 1024:
            continue
        return g
    return 1


@functools.partial(jax.jit, static_argnames=("block_rows",))
def ff_model_forward(obs, acs, stats, params, *, block_rows=4096):
    """Run the FFModel forward pass as a batch-tiled, lane-packed Pallas kernel.

    obs:  (N, ob_dim)     acs: (N, ac_dim)
    stats: dict of (1, dim) (or (dim,)) arrays
    params: {"w1_obs","w1_acs","b1","hidden": ((w,b),...), "w_out","b_out"}
    Returns (next_obs_pred, delta_pred_normalized).
    """
    n, ob_dim = obs.shape
    _, ac_dim = acs.shape
    size = params["b1"].shape[-1]
    num_extra_hidden = len(params["hidden"])
    n_layers = 1 + num_extra_hidden

    # ---- lane packing: G batch rows -> one packed row of G*d lanes ----------
    g = _choose_pack_factor(n, ob_dim, ac_dim, size, n_layers)
    np_rows = n // g

    def pack_batch(x):                    # (n, d) -> (n/g, g*d), layout-preserving
        return x.reshape(np_rows, g * x.shape[1])

    def tile_row(x):                      # (d,) or (1, d) -> (1, g*d)
        return jnp.tile(x.reshape(1, -1), (1, g))

    def block_diag(w):                    # (din, dout) -> (g*din, g*dout)
        return jnp.kron(jnp.eye(g, dtype=w.dtype), w)

    obs_p = pack_batch(obs)
    acs_p = pack_batch(acs)

    resident_inputs = (
        tile_row(stats["obs_mean"]), tile_row(stats["obs_std"]),
        tile_row(stats["acs_mean"]), tile_row(stats["acs_std"]),
        tile_row(stats["delta_mean"]), tile_row(stats["delta_std"]),
        block_diag(params["w1_obs"]), block_diag(params["w1_acs"]),
        tile_row(params["b1"]),
    )
    for (w, b) in params["hidden"]:
        resident_inputs += (block_diag(w), tile_row(b))
    resident_inputs += (block_diag(params["w_out"]), tile_row(params["b_out"]))

    # ---- batch tile (packed rows); sized well under the 32 MiB scoped VMEM --
    tm_p = max(1, min(block_rows // g, np_rows))
    if tm_p < np_rows:
        tm_p = max(8, (tm_p // 8) * 8)   # second-to-last block dim: multiple of 8
        tm_p = min(tm_p, np_rows)
    grid = (pl.cdiv(np_rows, tm_p),)     # ragged tail padded on load, masked on store

    def tile_spec(feat):
        # batch-tiled operand: new block each grid step
        return pl.BlockSpec((tm_p, feat), lambda i: (i, 0))

    def resident_spec(x):
        # weights / statistics: constant block -> stays VMEM-resident across steps
        nd = x.ndim
        return pl.BlockSpec(x.shape, lambda i: (0,) * nd)

    in_specs = [tile_spec(g * ob_dim), tile_spec(g * ac_dim)] + [
        resident_spec(x) for x in resident_inputs
    ]

    out_dtype = obs.dtype
    out_shape = (
        jax.ShapeDtypeStruct((np_rows, g * ob_dim), out_dtype),  # next_obs_pred (packed)
        jax.ShapeDtypeStruct((np_rows, g * ob_dim), out_dtype),  # delta_pred_norm (packed)
    )
    out_specs = (tile_spec(g * ob_dim), tile_spec(g * ob_dim))

    # Advisory cost estimate so XLA schedules neighbors sensibly.
    itemsize = jnp.dtype(out_dtype).itemsize
    d_in_p, h_p, o_p = g * (ob_dim + ac_dim), g * size, g * ob_dim
    matmul_flops = 2 * np_rows * (
        d_in_p * h_p + (n_layers - 1) * h_p * h_p + h_p * o_p
    )
    elementwise_flops = np_rows * (6 * o_p + 3 * g * ac_dim + 2 * n_layers * h_p)
    weight_elems = sum(int(x.size) for x in resident_inputs)
    io_elems = np_rows * (g * ob_dim + g * ac_dim + 2 * g * ob_dim)
    cost = pl.CostEstimate(
        flops=int(matmul_flops + elementwise_flops),
        transcendentals=int(n * size * n_layers),
        bytes_accessed=int(itemsize * io_elems + 4 * weight_elems),
    )

    compiler_params = pltpu.CompilerParams(
        # Batch tiles are independent -> shard across v7x's 2 TensorCores.
        dimension_semantics=("parallel",),
        # Explicit, conservative scoped-VMEM budget (fits all generations).
        vmem_limit_bytes=32 * 1024 * 1024,
    )

    kernel = _make_ff_kernel(num_extra_hidden)
    next_obs_p, delta_norm_p = pl.pallas_call(
        kernel,
        grid=grid,
        in_specs=in_specs,
        out_specs=out_specs,
        out_shape=out_shape,
        compiler_params=compiler_params,
        cost_estimate=cost,
    )(obs_p, acs_p, *resident_inputs)

    # Unpack back to the module's (N, ob_dim) interface (layout-preserving reshape).
    next_obs = next_obs_p.reshape(n, ob_dim)
    delta_norm = delta_norm_p.reshape(n, ob_dim)
    return next_obs, delta_norm


def init_params(key, ob_dim, ac_dim, size, n_layers):
    """Deterministic init mimicking torch.nn.Linear default U[-1/sqrt(fan_in), +]."""
    in_dim = ob_dim + ac_dim
    n_lin = n_layers + 1  # n_layers hidden Linear+Tanh, then output Linear
    ks = jax.random.split(key, 2 * n_lin)

    def unif(k, shape, fan_in):
        bound = 1.0 / jnp.sqrt(jnp.float32(fan_in))
        return jax.random.uniform(k, shape, jnp.float32, -bound, bound)

    w1 = unif(ks[0], (in_dim, size), in_dim)
    hidden = tuple(
        (
            unif(ks[2 + 2 * l], (size, size), size),
            unif(ks[3 + 2 * l], (1, size), size),
        )
        for l in range(n_layers - 1)
    )
    return {
        "w1_obs": w1[:ob_dim, :],
        "w1_acs": w1[ob_dim:, :],
        "b1": unif(ks[1], (1, size), in_dim),
        "hidden": hidden,
        "w_out": unif(ks[2 * n_layers], (size, ob_dim), size),
        "b_out": unif(ks[2 * n_layers + 1], (1, ob_dim), size),
    }


def _reference_forward(obs, acs, stats, params):
    """Pure-JAX reference (mirrors the PyTorch forward) for correctness checking."""
    obs_n = (obs - stats["obs_mean"]) / (stats["obs_std"] + EPS)
    acs_n = (acs - stats["acs_mean"]) / (stats["acs_std"] + EPS)
    x = jnp.concatenate([obs_n, acs_n], axis=1)
    w1 = jnp.concatenate([params["w1_obs"], params["w1_acs"]], axis=0)
    h = jnp.tanh(x @ w1 + params["b1"])
    for (w, b) in params["hidden"]:
        h = jnp.tanh(h @ w + b)
    delta_norm = h @ params["w_out"] + params["b_out"]
    next_obs = obs + delta_norm * stats["delta_std"] + stats["delta_mean"]
    return next_obs, delta_norm


if __name__ == "__main__":
    # Small demo shapes: batch=512, ob_dim=16, ac_dim=8, n_layers=2, size=32.
    # With pack factor G=8 the kernel sees 128-lane obs/output tiles; block_rows=128
    # gives a 4-step batch grid so the pipelining path is exercised.
    N, OB_DIM, AC_DIM, SIZE, N_LAYERS = 512, 16, 8, 32, 2

    key = jax.random.PRNGKey(0)
    k_obs, k_acs, k_stats, k_params = jax.random.split(key, 4)

    obs = jax.random.normal(k_obs, (N, OB_DIM), jnp.float32) * 2.0 + 0.5
    acs = jax.random.normal(k_acs, (N, AC_DIM), jnp.float32)

    ks = jax.random.split(k_stats, 6)
    stats = {
        "obs_mean": jax.random.normal(ks[0], (1, OB_DIM), jnp.float32),
        "obs_std": jnp.abs(jax.random.normal(ks[1], (1, OB_DIM), jnp.float32)) + 0.5,
        "acs_mean": jax.random.normal(ks[2], (1, AC_DIM), jnp.float32),
        "acs_std": jnp.abs(jax.random.normal(ks[3], (1, AC_DIM), jnp.float32)) + 0.5,
        "delta_mean": jax.random.normal(ks[4], (1, OB_DIM), jnp.float32),
        "delta_std": jnp.abs(jax.random.normal(ks[5], (1, OB_DIM), jnp.float32)) + 0.5,
    }

    params = init_params(k_params, OB_DIM, AC_DIM, SIZE, N_LAYERS)

    next_obs_pred, delta_pred_norm = ff_model_forward(
        obs, acs, stats, params, block_rows=128
    )
    jax.block_until_ready((next_obs_pred, delta_pred_norm))

    # Sanity check against pure-JAX reference.
    ref_next, ref_delta = _reference_forward(obs, acs, stats, params)
    assert jnp.allclose(next_obs_pred, ref_next, atol=1e-4, rtol=1e-4)
    assert jnp.allclose(delta_pred_norm, ref_delta, atol=1e-4, rtol=1e-4)

    print("KERNEL_OK")
</pallas_src>

<mosaic_0001>
module attributes {stable_mosaic.version = 11 : i64} {
  func.func @kernel(%arg0: i32, %arg1: memref<16x128xf32, #tpu.memory_space<vmem>>, %arg2: memref<16x64xf32, #tpu.memory_space<vmem>>, %arg3: memref<1x128xf32, #tpu.memory_space<vmem>>, %arg4: memref<1x128xf32, #tpu.memory_space<vmem>>, %arg5: memref<1x64xf32, #tpu.memory_space<vmem>>, %arg6: memref<1x64xf32, #tpu.memory_space<vmem>>, %arg7: memref<1x128xf32, #tpu.memory_space<vmem>>, %arg8: memref<1x128xf32, #tpu.memory_space<vmem>>, %arg9: memref<128x256xf32, #tpu.memory_space<vmem>>, %arg10: memref<64x256xf32, #tpu.memory_space<vmem>>, %arg11: memref<1x256xf32, #tpu.memory_space<vmem>>, %arg12: memref<256x256xf32, #tpu.memory_space<vmem>>, %arg13: memref<1x256xf32, #tpu.memory_space<vmem>>, %arg14: memref<256x128xf32, #tpu.memory_space<vmem>>, %arg15: memref<1x128xf32, #tpu.memory_space<vmem>>, %arg16: memref<16x128xf32, #tpu.memory_space<vmem>>, %arg17: memref<16x128xf32, #tpu.memory_space<vmem>>) attributes {dimension_semantics = [#tpu.dimension_semantics<parallel>], iteration_bounds = array<i64: 4>, scalar_prefetch = 0 : i64, scratch_operands = 0 : i64, tpu.core_type = #tpu.core_type<tc>, window_params = [{transform_indices = @transform_0, window_bounds = array<i64: 16, 128>}, {transform_indices = @transform_1, window_bounds = array<i64: 16, 64>}, {pipeline_mode = #tpu.pipeline_mode<synchronous>, transform_indices = @transform_2, window_bounds = array<i64: 1, 128>}, {pipeline_mode = #tpu.pipeline_mode<synchronous>, transform_indices = @transform_3, window_bounds = array<i64: 1, 128>}, {pipeline_mode = #tpu.pipeline_mode<synchronous>, transform_indices = @transform_4, window_bounds = array<i64: 1, 64>}, {pipeline_mode = #tpu.pipeline_mode<synchronous>, transform_indices = @transform_5, window_bounds = array<i64: 1, 64>}, {pipeline_mode = #tpu.pipeline_mode<synchronous>, transform_indices = @transform_6, window_bounds = array<i64: 1, 128>}, {pipeline_mode = #tpu.pipeline_mode<synchronous>, transform_indices = @transform_7, window_bounds = array<i64: 1, 128>}, {pipeline_mode = #tpu.pipeline_mode<synchronous>, transform_indices = @transform_8, window_bounds = array<i64: 128, 256>}, {pipeline_mode = #tpu.pipeline_mode<synchronous>, transform_indices = @transform_9, window_bounds = array<i64: 64, 256>}, {pipeline_mode = #tpu.pipeline_mode<synchronous>, transform_indices = @transform_10, window_bounds = array<i64: 1, 256>}, {pipeline_mode = #tpu.pipeline_mode<synchronous>, transform_indices = @transform_11, window_bounds = array<i64: 256, 256>}, {pipeline_mode = #tpu.pipeline_mode<synchronous>, transform_indices = @transform_12, window_bounds = array<i64: 1, 256>}, {pipeline_mode = #tpu.pipeline_mode<synchronous>, transform_indices = @transform_13, window_bounds = array<i64: 256, 128>}, {pipeline_mode = #tpu.pipeline_mode<synchronous>, transform_indices = @transform_14, window_bounds = array<i64: 1, 128>}, {transform_indices = @transform_15, window_bounds = array<i64: 16, 128>}, {transform_indices = @transform_16, window_bounds = array<i64: 16, 128>}]} {
    %c0 = arith.constant 0 : index
    %c0_0 = arith.constant 0 : index
    %0 = vector.load %arg1[%c0, %c0_0] : memref<16x128xf32, #tpu.memory_space<vmem>>, vector<16x128xf32>
    %c0_1 = arith.constant 0 : index
    %c0_2 = arith.constant 0 : index
    %1 = vector.load %arg2[%c0_1, %c0_2] : memref<16x64xf32, #tpu.memory_space<vmem>>, vector<16x64xf32>
    %c0_3 = arith.constant 0 : index
    %c0_4 = arith.constant 0 : index
    %2 = vector.load %arg4[%c0_3, %c0_4] : memref<1x128xf32, #tpu.memory_space<vmem>>, vector<1x128xf32>
    %cst = arith.constant 9.99999993E-9 : f32
    %3 = vector.broadcast %cst : f32 to vector<1x128xf32>
    %4 = arith.addf %2, %3 : vector<1x128xf32>
    %cst_5 = arith.constant 1.000000e+00 : f32
    %5 = vector.broadcast %cst_5 : f32 to vector<1x128xf32>
    %6 = arith.divf %5, %4 : vector<1x128xf32>
    %c0_6 = arith.constant 0 : index
    %c0_7 = arith.constant 0 : index
    %7 = vector.load %arg6[%c0_6, %c0_7] : memref<1x64xf32, #tpu.memory_space<vmem>>, vector<1x64xf32>
    %cst_8 = arith.constant 9.99999993E-9 : f32
    %8 = vector.broadcast %cst_8 : f32 to vector<1x64xf32>
    %9 = arith.addf %7, %8 : vector<1x64xf32>
    %cst_9 = arith.constant 1.000000e+00 : f32
    %10 = vector.broadcast %cst_9 : f32 to vector<1x64xf32>
    %11 = arith.divf %10, %9 : vector<1x64xf32>
    %c0_10 = arith.constant 0 : index
    %c0_11 = arith.constant 0 : index
    %12 = vector.load %arg3[%c0_10, %c0_11] : memref<1x128xf32, #tpu.memory_space<vmem>>, vector<1x128xf32>
    %13 = vector.broadcast %12 : vector<1x128xf32> to vector<16x128xf32>
    %14 = arith.subf %0, %13 : vector<16x128xf32>
    %15 = vector.broadcast %6 : vector<1x128xf32> to vector<16x128xf32>
    %16 = arith.mulf %14, %15 : vector<16x128xf32>
    %c0_12 = arith.constant 0 : index
    %c0_13 = arith.constant 0 : index
    %17 = vector.load %arg5[%c0_12, %c0_13] : memref<1x64xf32, #tpu.memory_space<vmem>>, vector<1x64xf32>
    %18 = vector.broadcast %17 : vector<1x64xf32> to vector<16x64xf32>
    %19 = arith.subf %1, %18 : vector<16x64xf32>
    %20 = vector.broadcast %11 : vector<1x64xf32> to vector<16x64xf32>
    %21 = arith.mulf %19, %20 : vector<16x64xf32>
    %c0_14 = arith.constant 0 : index
    %c0_15 = arith.constant 0 : index
    %22 = vector.load %arg9[%c0_14, %c0_15] : memref<128x256xf32, #tpu.memory_space<vmem>>, vector<128x256xf32>
    %cst_16 = arith.constant dense<0.000000e+00> : vector<16x256xf32>
    %23 = tpu.matmul %16, %22, %cst_16 {dimension_numbers = #tpu.dot_dimension_numbers<[1], [0], [0], [1], [0, 0, 1, 1], [], []>} : vector<16x128xf32>, vector<128x256xf32>, vector<16x256xf32> -> vector<16x256xf32>
    %c0_17 = arith.constant 0 : index
    %c0_18 = arith.constant 0 : index
    %24 = vector.load %arg10[%c0_17, %c0_18] : memref<64x256xf32, #tpu.memory_space<vmem>>, vector<64x256xf32>
    %cst_19 = arith.constant dense<0.000000e+00> : vector<16x256xf32>
    %25 = tpu.matmul %21, %24, %cst_19 {dimension_numbers = #tpu.dot_dimension_numbers<[1], [0], [0], [1], [0, 0, 1, 1], [], []>} : vector<16x64xf32>, vector<64x256xf32>, vector<16x256xf32> -> vector<16x256xf32>
    %26 = arith.addf %23, %25 : vector<16x256xf32>
    %c0_20 = arith.constant 0 : index
    %c0_21 = arith.constant 0 : index
    %27 = vector.load %arg11[%c0_20, %c0_21] : memref<1x256xf32, #tpu.memory_space<vmem>>, vector<1x256xf32>
    %28 = vector.broadcast %27 : vector<1x256xf32> to vector<16x256xf32>
    %29 = arith.addf %26, %28 : vector<16x256xf32>
    %30 = math.tanh %29 : vector<16x256xf32>
    %c0_22 = arith.constant 0 : index
    %c0_23 = arith.constant 0 : index
    %31 = vector.load %arg12[%c0_22, %c0_23] : memref<256x256xf32, #tpu.memory_space<vmem>>, vector<256x256xf32>
    %cst_24 = arith.constant dense<0.000000e+00> : vector<16x256xf32>
    %32 = tpu.matmul %30, %31, %cst_24 {dimension_numbers = #tpu.dot_dimension_numbers<[1], [0], [0], [1], [0, 0, 1, 1], [], []>} : vector<16x256xf32>, vector<256x256xf32>, vector<16x256xf32> -> vector<16x256xf32>
    %c0_25 = arith.constant 0 : index
    %c0_26 = arith.constant 0 : index
    %33 = vector.load %arg13[%c0_25, %c0_26] : memref<1x256xf32, #tpu.memory_space<vmem>>, vector<1x256xf32>
    %34 = vector.broadcast %33 : vector<1x256xf32> to vector<16x256xf32>
    %35 = arith.addf %32, %34 : vector<16x256xf32>
    %36 = math.tanh %35 : vector<16x256xf32>
    %c0_27 = arith.constant 0 : index
    %c0_28 = arith.constant 0 : index
    %37 = vector.load %arg14[%c0_27, %c0_28] : memref<256x128xf32, #tpu.memory_space<vmem>>, vector<256x128xf32>
    %cst_29 = arith.constant dense<0.000000e+00> : vector<16x128xf32>
    %38 = tpu.matmul %36, %37, %cst_29 {dimension_numbers = #tpu.dot_dimension_numbers<[1], [0], [0], [1], [0, 0, 1, 1], [], []>} : vector<16x256xf32>, vector<256x128xf32>, vector<16x128xf32> -> vector<16x128xf32>
    %c0_30 = arith.constant 0 : index
    %c0_31 = arith.constant 0 : index
    %39 = vector.load %arg15[%c0_30, %c0_31] : memref<1x128xf32, #tpu.memory_space<vmem>>, vector<1x128xf32>
    %40 = vector.broadcast %39 : vector<1x128xf32> to vector<16x128xf32>
    %41 = arith.addf %38, %40 : vector<16x128xf32>
    %c0_32 = arith.constant 0 : index
    %c0_33 = arith.constant 0 : index
    %42 = vector.load %arg17[%c0_32, %c0_33] : memref<16x128xf32, #tpu.memory_space<vmem>>, vector<16x128xf32>
    tpu.vector_store %arg17[%c0_32, %c0_33], %41 {strides = array<i32>} : memref<16x128xf32, #tpu.memory_space<vmem>>, vector<16x128xf32>,
    %c0_34 = arith.constant 0 : index
    %c0_35 = arith.constant 0 : index
    %43 = vector.load %arg8[%c0_34, %c0_35] : memref<1x128xf32, #tpu.memory_space<vmem>>, vector<1x128xf32>
    %44 = vector.broadcast %43 : vector<1x128xf32> to vector<16x128xf32>
    %45 = arith.mulf %41, %44 : vector<16x128xf32>
    %46 = arith.addf %0, %45 : vector<16x128xf32>
    %c0_36 = arith.constant 0 : index
    %c0_37 = arith.constant 0 : index
    %47 = vector.load %arg7[%c0_36, %c0_37] : memref<1x128xf32, #tpu.memory_space<vmem>>, vector<1x128xf32>
    %48 = vector.broadcast %47 : vector<1x128xf32> to vector<16x128xf32>
    %49 = arith.addf %46, %48 : vector<16x128xf32>
    %c0_38 = arith.constant 0 : index
    %c0_39 = arith.constant 0 : index
    %50 = vector.load %arg16[%c0_38, %c0_39] : memref<16x128xf32, #tpu.memory_space<vmem>>, vector<16x128xf32>
    tpu.vector_store %arg16[%c0_38, %c0_39], %49 {strides = array<i32>} : memref<16x128xf32, #tpu.memory_space<vmem>>, vector<16x128xf32>,
    return
  }
  func.func @transform_0(%arg0: i32) -> (i32, i32) {
    %c0_i32 = arith.constant 0 : i32
    %c0_i32_0 = arith.constant 0 : i32
    return %arg0, %c0_i32 : i32, i32
  }
  func.func @transform_1(%arg0: i32) -> (i32, i32) {
    %c0_i32 = arith.constant 0 : i32
    %c0_i32_0 = arith.constant 0 : i32
    return %arg0, %c0_i32 : i32, i32
  }
  func.func @transform_2(%arg0: i32) -> (i32, i32) {
    %c0_i32 = arith.constant 0 : i32
    %c0_i32_0 = arith.constant 0 : i32
    %c0_i32_1 = arith.constant 0 : i32
    return %c0_i32, %c0_i32_0 : i32, i32
  }
  func.func @transform_3(%arg0: i32) -> (i32, i32) {
    %c0_i32 = arith.constant 0 : i32
    %c0_i32_0 = arith.constant 0 : i32
    %c0_i32_1 = arith.constant 0 : i32
    return %c0_i32, %c0_i32_0 : i32, i32
  }
  func.func @transform_4(%arg0: i32) -> (i32, i32) {
    %c0_i32 = arith.constant 0 : i32
    %c0_i32_0 = arith.constant 0 : i32
    %c0_i32_1 = arith.constant 0 : i32
    return %c0_i32, %c0_i32_0 : i32, i32
  }
  func.func @transform_5(%arg0: i32) -> (i32, i32) {
    %c0_i32 = arith.constant 0 : i32
    %c0_i32_0 = arith.constant 0 : i32
    %c0_i32_1 = arith.constant 0 : i32
    return %c0_i32, %c0_i32_0 : i32, i32
  }
  func.func @transform_6(%arg0: i32) -> (i32, i32) {
    %c0_i32 = arith.constant 0 : i32
    %c0_i32_0 = arith.constant 0 : i32
    %c0_i32_1 = arith.constant 0 : i32
    return %c0_i32, %c0_i32_0 : i32, i32
  }
  func.func @transform_7(%arg0: i32) -> (i32, i32) {
    %c0_i32 = arith.constant 0 : i32
    %c0_i32_0 = arith.constant 0 : i32
    %c0_i32_1 = arith.constant 0 : i32
    return %c0_i32, %c0_i32_0 : i32, i32
  }
  func.func @transform_8(%arg0: i32) -> (i32, i32) {
    %c0_i32 = arith.constant 0 : i32
    %c0_i32_0 = arith.constant 0 : i32
    %c0_i32_1 = arith.constant 0 : i32
    return %c0_i32, %c0_i32_0 : i32, i32
  }
  func.func @transform_9(%arg0: i32) -> (i32, i32) {
    %c0_i32 = arith.constant 0 : i32
    %c0_i32_0 = arith.constant 0 : i32
    %c0_i32_1 = arith.constant 0 : i32
    return %c0_i32, %c0_i32_0 : i32, i32
  }
  func.func @transform_10(%arg0: i32) -> (i32, i32) {
    %c0_i32 = arith.constant 0 : i32
    %c0_i32_0 = arith.constant 0 : i32
    %c0_i32_1 = arith.constant 0 : i32
    return %c0_i32, %c0_i32_0 : i32, i32
  }
  func.func @transform_11(%arg0: i32) -> (i32, i32) {
    %c0_i32 = arith.constant 0 : i32
    %c0_i32_0 = arith.constant 0 : i32
    %c0_i32_1 = arith.constant 0 : i32
    return %c0_i32, %c0_i32_0 : i32, i32
  }
  func.func @transform_12(%arg0: i32) -> (i32, i32) {
    %c0_i32 = arith.constant 0 : i32
    %c0_i32_0 = arith.constant 0 : i32
    %c0_i32_1 = arith.constant 0 : i32
    return %c0_i32, %c0_i32_0 : i32, i32
  }
  func.func @transform_13(%arg0: i32) -> (i32, i32) {
    %c0_i32 = arith.constant 0 : i32
    %c0_i32_0 = arith.constant 0 : i32
    %c0_i32_1 = arith.constant 0 : i32
    return %c0_i32, %c0_i32_0 : i32, i32
  }
  func.func @transform_14(%arg0: i32) -> (i32, i32) {
    %c0_i32 = arith.constant 0 : i32
    %c0_i32_0 = arith.constant 0 : i32
    %c0_i32_1 = arith.constant 0 : i32
    return %c0_i32, %c0_i32_0 : i32, i32
  }
  func.func @transform_15(%arg0: i32) -> (i32, i32) {
    %c0_i32 = arith.constant 0 : i32
    %c0_i32_0 = arith.constant 0 : i32
    return %arg0, %c0_i32 : i32, i32
  }
  func.func @transform_16(%arg0: i32) -> (i32, i32) {
    %c0_i32 = arith.constant 0 : i32
    %c0_i32_0 = arith.constant 0 : i32
    return %arg0, %c0_i32 : i32, i32
  }
}

</mosaic_0001>

<llo_original>
// kernel: ff_model_forward.1
$region0: #{ff_model_forward.1}
  #allocation0 [shape = 'u32[]', space=smem, size = 0x4, offset = 0x4, fixed_abs, tag = 'smem constant byte address 0x4 - core index']
  #allocation1 [shape = 'u32[144,128]{1,0:T(1,128)}', space=vmem, size = 0x12000, scoped, tag = 'internal scratch']
  %s0 = inlined_call_operand.vmem [shape: f32[64,128], index: 0, kind: input, shape index: {}]
  %s1 = inlined_call_operand.vmem [shape: f32[64,64], index: 1, kind: input, shape index: {}]
  %s2 = inlined_call_operand.vmem [shape: f32[1,128], index: 2, kind: input, shape index: {}]
  %s3 = inlined_call_operand.vmem [shape: f32[1,128], index: 3, kind: input, shape index: {}]
  %s4 = inlined_call_operand.vmem [shape: f32[1,64], index: 4, kind: input, shape index: {}]
  %s5 = inlined_call_operand.vmem [shape: f32[1,64], index: 5, kind: input, shape index: {}]
  %s6 = inlined_call_operand.vmem [shape: f32[1,128], index: 6, kind: input, shape index: {}]
  %s7 = inlined_call_operand.vmem [shape: f32[1,128], index: 7, kind: input, shape index: {}]
  %s8 = inlined_call_operand.vmem [shape: f32[128,256], index: 8, kind: input, shape index: {}]
  %s9 = inlined_call_operand.vmem [shape: f32[64,256], index: 9, kind: input, shape index: {}]
  %s10 = inlined_call_operand.vmem [shape: f32[1,256], index: 10, kind: input, shape index: {}]
  %s11 = inlined_call_operand.vmem [shape: f32[256,256], index: 11, kind: input, shape index: {}]
  %s12 = inlined_call_operand.vmem [shape: f32[1,256], index: 12, kind: input, shape index: {}]
  %s13 = inlined_call_operand.vmem [shape: f32[256,128], index: 13, kind: input, shape index: {}]
  %s14 = inlined_call_operand.vmem [shape: f32[1,128], index: 14, kind: input, shape index: {}]
  %s15 = inlined_call_operand.vmem [shape: f32[64,128], index: 15, kind: output, shape index: {0}]
  %s16 = inlined_call_operand.vmem [shape: f32[64,128], index: 16, kind: output, shape index: {1}]
  %17 = xla_tuple %s15, %s16
  %s18 = sld [smem:[#allocation0]]
  $region101: #{ff_model_forward.1} parent=0
    _
  %s20 = ssub.s32 1, %s18
  %s21 = scalar_select 0, %s20, %s18
  loop: start=0, step=1, limit=6
  $region2: #{ff_model_forward.1} parent=0 // loop_pre_header
    _
  $region3: #{ff_model_forward.1} parent=0 // loop_header
    %s23 = sphi 0, %s27
    %p24 = scmp.ge.s32.totalorder %s23, 6
    %s33 = sphi 0, %s35
    %s36 = sphi 0, %s33
    %s37 = sphi 0, %s36
    %s53 = sphi 0, %s37
    %s59 = sphi 0, %s61
    %s62 = sphi 0, %s59
    %s63 = sphi 0, %s62
    %s79 = sphi 0, %s63
    %s83 = sphi 0, %s83
    %s85 = sphi 0, %s83
    %s86 = sphi 0, %s85
    %s100 = sphi 0, %s86
    %s104 = sphi 0, %s104
    %s106 = sphi 0, %s104
    %s107 = sphi 0, %s106
    %s121 = sphi 0, %s107
    %s125 = sphi 0, %s125
    %s127 = sphi 0, %s125
    %s128 = sphi 0, %s127
    %s142 = sphi 0, %s128
    %s146 = sphi 0, %s146
    %s148 = sphi 0, %s146
    %s149 = sphi 0, %s148
    %s163 = sphi 0, %s149
    %s167 = sphi 0, %s167
    %s169 = sphi 0, %s167
    %s170 = sphi 0, %s169
    %s184 = sphi 0, %s170
    %s188 = sphi 0, %s188
    %s190 = sphi 0, %s188
    %s191 = sphi 0, %s190
    %s205 = sphi 0, %s191
    %s209 = sphi 0, %s209
    %s211 = sphi 0, %s209
    %s212 = sphi 0, %s211
    %s226 = sphi 0, %s212
    %s230 = sphi 0, %s230
    %s232 = sphi 0, %s230
    %s233 = sphi 0, %s232
    %s247 = sphi 0, %s233
    %s251 = sphi 0, %s251
    %s253 = sphi 0, %s251
    %s254 = sphi 0, %s253
    %s268 = sphi 0, %s254
    %s272 = sphi 0, %s272
    %s274 = sphi 0, %s272
    %s275 = sphi 0, %s274
    %s289 = sphi 0, %s275
    %s293 = sphi 0, %s293
    %s295 = sphi 0, %s293
    %s296 = sphi 0, %s295
    %s310 = sphi 0, %s296
    %s314 = sphi 0, %s314
    %s316 = sphi 0, %s314
    %s317 = sphi 0, %s316
    %s331 = sphi 0, %s317
    %s335 = sphi 0, %s335
    %s337 = sphi 0, %s335
    %s338 = sphi 0, %s337
    %s352 = sphi 0, %s338
    %s358 = sphi 0, %s360
    %s361 = sphi 0, %s358
    %s362 = sphi 0, %s361
    %s378 = sphi 0, %s362
    %s384 = sphi 0, %s386
    %s387 = sphi 0, %s384
    %s388 = sphi 0, %s387
    %s404 = sphi 0, %s388
  $region4: #{ff_model_forward.1} parent=0 // loop_header_branch
    %26 = sbr.rel (%p24) target = $region8
  $region5: #{ff_model_forward.1} parent=0 // loop_body
    %s28 = ssub.s32 %s23, 1
    %s29 = ssub.s32 %s23, 2
    %s30 = sadd.s32 %s23, 1
    %s31 = ssub.s32 %s23, %s30
    %p32 = scmp.eq.s32.totalorder %s31, 0
    %s34 = sadd.s32 %s33, 1
    %s35 = scalar_select %p32, %s33, %s34
    %p38 = pneg %p32
    %p39 = scmp.eq.s32.totalorder %s23, 3
    %p40 = por %p38, %p39
    %p41 = scmp.ne.s32.totalorder %s33, %s36
    %p42 = scmp.eq.s32.totalorder %s23, 0
    %p43 = por %p41, %p42
    %p44 = scmp.ne.s32.totalorder %s33, %s36
    %p45 = scmp.eq.s32.totalorder %s28, 3
    %p46 = por %p44, %p45
    %p47 = scmp.ne.s32.totalorder %s36, %s37
    %p48 = scmp.eq.s32.totalorder %s28, 0
    %p49 = por %p47, %p48
    %p50 = scmp.ne.s32.totalorder %s36, %s37
    %p51 = scmp.eq.s32.totalorder %s29, 3
    %p52 = por %p50, %p51
    %p54 = scmp.ne.s32.totalorder %s37, %s53
    %p55 = scmp.eq.s32.totalorder %s29, 0
    %p56 = por %p54, %p55
    %s57 = ssub.s32 %s23, %s30
    %p58 = scmp.eq.s32.totalorder %s57, 0
    %s60 = sadd.s32 %s59, 1
    %s61 = scalar_select %p58, %s59, %s60
    %p64 = pneg %p58
    %p65 = scmp.eq.s32.totalorder %s23, 3
    %p66 = por %p64, %p65
    %p67 = scmp.ne.s32.totalorder %s59, %s62
    %p68 = scmp.eq.s32.totalorder %s23, 0
    %p69 = por %p67, %p68
    %p70 = scmp.ne.s32.totalorder %s59, %s62
    %p71 = scmp.eq.s32.totalorder %s28, 3
    %p72 = por %p70, %p71
    %p73 = scmp.ne.s32.totalorder %s62, %s63
    %p74 = scmp.eq.s32.totalorder %s28, 0
    %p75 = por %p73, %p74
    %p76 = scmp.ne.s32.totalorder %s62, %s63
    %p77 = scmp.eq.s32.totalorder %s29, 3
    %p78 = por %p76, %p77
    %p80 = scmp.ne.s32.totalorder %s63, %s79
    %p81 = scmp.eq.s32.totalorder %s29, 0
    %p82 = por %p80, %p81
    %s84 = sadd.s32 %s83, 1
    %p87 = scmp.eq.s32.totalorder %s23, 3
    %p88 = scmp.ne.s32.totalorder %s83, %s85
    %p89 = scmp.eq.s32.totalorder %s23, 0
    %p90 = por %p88, %p89
    %p91 = scmp.ne.s32.totalorder %s83, %s85
    %p92 = scmp.eq.s32.totalorder %s28, 3
    %p93 = por %p91, %p92
    %p94 = scmp.ne.s32.totalorder %s85, %s86
    %p95 = scmp.eq.s32.totalorder %s28, 0
    %p96 = por %p94, %p95
    %p97 = scmp.ne.s32.totalorder %s85, %s86
    %p98 = scmp.eq.s32.totalorder %s29, 3
    %p99 = por %p97, %p98
    %p101 = scmp.ne.s32.totalorder %s86, %s100
    %p102 = scmp.eq.s32.totalorder %s29, 0
    %p103 = por %p101, %p102
    %s105 = sadd.s32 %s104, 1
    %p108 = scmp.eq.s32.totalorder %s23, 3
    %p109 = scmp.ne.s32.totalorder %s104, %s106
    %p110 = scmp.eq.s32.totalorder %s23, 0
    %p111 = por %p109, %p110
    %p112 = scmp.ne.s32.totalorder %s104, %s106
    %p113 = scmp.eq.s32.totalorder %s28, 3
    %p114 = por %p112, %p113
    %p115 = scmp.ne.s32.totalorder %s106, %s107
    %p116 = scmp.eq.s32.totalorder %s28, 0
    %p117 = por %p115, %p116
    %p118 = scmp.ne.s32.totalorder %s106, %s107
    %p119 = scmp.eq.s32.totalorder %s29, 3
    %p120 = por %p118, %p119
    %p122 = scmp.ne.s32.totalorder %s107, %s121
    %p123 = scmp.eq.s32.totalorder %s29, 0
    %p124 = por %p122, %p123
    %s126 = sadd.s32 %s125, 1
    %p129 = scmp.eq.s32.totalorder %s23, 3
    %p130 = scmp.ne.s32.totalorder %s125, %s127
    %p131 = scmp.eq.s32.totalorder %s23, 0
    %p132 = por %p130, %p131
    %p133 = scmp.ne.s32.totalorder %s125, %s127
    %p134 = scmp.eq.s32.totalorder %s28, 3
    %p135 = por %p133, %p134
    %p136 = scmp.ne.s32.totalorder %s127, %s128
    %p137 = scmp.eq.s32.totalorder %s28, 0
    %p138 = por %p136, %p137
    %p139 = scmp.ne.s32.totalorder %s127, %s128
    %p140 = scmp.eq.s32.totalorder %s29, 3
    %p141 = por %p139, %p140
    %p143 = scmp.ne.s32.totalorder %s128, %s142
    %p144 = scmp.eq.s32.totalorder %s29, 0
    %p145 = por %p143, %p144
    %s147 = sadd.s32 %s146, 1
    %p150 = scmp.eq.s32.totalorder %s23, 3
    %p151 = scmp.ne.s32.totalorder %s146, %s148
    %p152 = scmp.eq.s32.totalorder %s23, 0
    %p153 = por %p151, %p152
    %p154 = scmp.ne.s32.totalorder %s146, %s148
    %p155 = scmp.eq.s32.totalorder %s28, 3
    %p156 = por %p154, %p155
    %p157 = scmp.ne.s32.totalorder %s148, %s149
    %p158 = scmp.eq.s32.totalorder %s28, 0
    %p159 = por %p157, %p158
    %p160 = scmp.ne.s32.totalorder %s148, %s149
    %p161 = scmp.eq.s32.totalorder %s29, 3
    %p162 = por %p160, %p161
    %p164 = scmp.ne.s32.totalorder %s149, %s163
    %p165 = scmp.eq.s32.totalorder %s29, 0
    %p166 = por %p164, %p165
    %s168 = sadd.s32 %s167, 1
    %p171 = scmp.eq.s32.totalorder %s23, 3
    %p172 = scmp.ne.s32.totalorder %s167, %s169
    %p173 = scmp.eq.s32.totalorder %s23, 0
    %p174 = por %p172, %p173
    %p175 = scmp.ne.s32.totalorder %s167, %s169
    %p176 = scmp.eq.s32.totalorder %s28, 3
    %p177 = por %p175, %p176
    %p178 = scmp.ne.s32.totalorder %s169, %s170
    %p179 = scmp.eq.s32.totalorder %s28, 0
    %p180 = por %p178, %p179
    %p181 = scmp.ne.s32.totalorder %s169, %s170
    %p182 = scmp.eq.s32.totalorder %s29, 3
    %p183 = por %p181, %p182
    %p185 = scmp.ne.s32.totalorder %s170, %s184
    %p186 = scmp.eq.s32.totalorder %s29, 0
    %p187 = por %p185, %p186
    %s189 = sadd.s32 %s188, 1
    %p192 = scmp.eq.s32.totalorder %s23, 3
    %p193 = scmp.ne.s32.totalorder %s188, %s190
    %p194 = scmp.eq.s32.totalorder %s23, 0
    %p195 = por %p193, %p194
    %p196 = scmp.ne.s32.totalorder %s188, %s190
    %p197 = scmp.eq.s32.totalorder %s28, 3
    %p198 = por %p196, %p197
    %p199 = scmp.ne.s32.totalorder %s190, %s191
    %p200 = scmp.eq.s32.totalorder %s28, 0
    %p201 = por %p199, %p200
    %p202 = scmp.ne.s32.totalorder %s190, %s191
    %p203 = scmp.eq.s32.totalorder %s29, 3
    %p204 = por %p202, %p203
    %p206 = scmp.ne.s32.totalorder %s191, %s205
    %p207 = scmp.eq.s32.totalorder %s29, 0
    %p208 = por %p206, %p207
    %s210 = sadd.s32 %s209, 1
    %p213 = scmp.eq.s32.totalorder %s23, 3
    %p214 = scmp.ne.s32.totalorder %s209, %s211
    %p215 = scmp.eq.s32.totalorder %s23, 0
    %p216 = por %p214, %p215
    %p217 = scmp.ne.s32.totalorder %s209, %s211
    %p218 = scmp.eq.s32.totalorder %s28, 3
    %p219 = por %p217, %p218
    %p220 = scmp.ne.s32.totalorder %s211, %s212
    %p221 = scmp.eq.s32.totalorder %s28, 0
    %p222 = por %p220, %p221
    %p223 = scmp.ne.s32.totalorder %s211, %s212
    %p224 = scmp.eq.s32.totalorder %s29, 3
    %p225 = por %p223, %p224
    %p227 = scmp.ne.s32.totalorder %s212, %s226
    %p228 = scmp.eq.s32.totalorder %s29, 0
    %p229 = por %p227, %p228
    %s231 = sadd.s32 %s230, 1
    %p234 = scmp.eq.s32.totalorder %s23, 3
    %p235 = scmp.ne.s32.totalorder %s230, %s232
    %p236 = scmp.eq.s32.totalorder %s23, 0
    %p237 = por %p235, %p236
    %p238 = scmp.ne.s32.totalorder %s230, %s232
    %p239 = scmp.eq.s32.totalorder %s28, 3
    %p240 = por %p238, %p239
    %p241 = scmp.ne.s32.totalorder %s232, %s233
    %p242 = scmp.eq.s32.totalorder %s28, 0
    %p243 = por %p241, %p242
    %p244 = scmp.ne.s32.totalorder %s232, %s233
    %p245 = scmp.eq.s32.totalorder %s29, 3
    %p246 = por %p244, %p245
    %p248 = scmp.ne.s32.totalorder %s233, %s247
    %p249 = scmp.eq.s32.totalorder %s29, 0
    %p250 = por %p248, %p249
    %s252 = sadd.s32 %s251, 1
    %p255 = scmp.eq.s32.totalorder %s23, 3
    %p256 = scmp.ne.s32.totalorder %s251, %s253
    %p257 = scmp.eq.s32.totalorder %s23, 0
    %p258 = por %p256, %p257
    %p259 = scmp.ne.s32.totalorder %s251, %s253
    %p260 = scmp.eq.s32.totalorder %s28, 3
    %p261 = por %p259, %p260
    %p262 = scmp.ne.s32.totalorder %s253, %s254
    %p263 = scmp.eq.s32.totalorder %s28, 0
    %p264 = por %p262, %p263
    %p265 = scmp.ne.s32.totalorder %s253, %s254
    %p266 = scmp.eq.s32.totalorder %s29, 3
    %p267 = por %p265, %p266
    %p269 = scmp.ne.s32.totalorder %s254, %s268
    %p270 = scmp.eq.s32.totalorder %s29, 0
    %p271 = por %p269, %p270
    %s273 = sadd.s32 %s272, 1
    %p276 = scmp.eq.s32.totalorder %s23, 3
    %p277 = scmp.ne.s32.totalorder %s272, %s274
    %p278 = scmp.eq.s32.totalorder %s23, 0
    %p279 = por %p277, %p278
    %p280 = scmp.ne.s32.totalorder %s272, %s274
    %p281 = scmp.eq.s32.totalorder %s28, 3
    %p282 = por %p280, %p281
    %p283 = scmp.ne.s32.totalorder %s274, %s275
    %p284 = scmp.eq.s32.totalorder %s28, 0
    %p285 = por %p283, %p284
    %p286 = scmp.ne.s32.totalorder %s274, %s275
    %p287 = scmp.eq.s32.totalorder %s29, 3
    %p288 = por %p286, %p287
    %p290 = scmp.ne.s32.totalorder %s275, %s289
    %p291 = scmp.eq.s32.totalorder %s29, 0
    %p292 = por %p290, %p291
    %s294 = sadd.s32 %s293, 1
    %p297 = scmp.eq.s32.totalorder %s23, 3
    %p298 = scmp.ne.s32.totalorder %s293, %s295
    %p299 = scmp.eq.s32.totalorder %s23, 0
    %p300 = por %p298, %p299
    %p301 = scmp.ne.s32.totalorder %s293, %s295
    %p302 = scmp.eq.s32.totalorder %s28, 3
    %p303 = por %p301, %p302
    %p304 = scmp.ne.s32.totalorder %s295, %s296
    %p305 = scmp.eq.s32.totalorder %s28, 0
    %p306 = por %p304, %p305
    %p307 = scmp.ne.s32.totalorder %s295, %s296
    %p308 = scmp.eq.s32.totalorder %s29, 3
    %p309 = por %p307, %p308
    %p311 = scmp.ne.s32.totalorder %s296, %s310
    %p312 = scmp.eq.s32.totalorder %s29, 0
    %p313 = por %p311, %p312
    %s315 = sadd.s32 %s314, 1
    %p318 = scmp.eq.s32.totalorder %s23, 3
    %p319 = scmp.ne.s32.totalorder %s314, %s316
    %p320 = scmp.eq.s32.totalorder %s23, 0
    %p321 = por %p319, %p320
    %p322 = scmp.ne.s32.totalorder %s314, %s316
    %p323 = scmp.eq.s32.totalorder %s28, 3
    %p324 = por %p322, %p323
    %p325 = scmp.ne.s32.totalorder %s316, %s317
    %p326 = scmp.eq.s32.totalorder %s28, 0
    %p327 = por %p325, %p326
    %p328 = scmp.ne.s32.totalorder %s316, %s317
    %p329 = scmp.eq.s32.totalorder %s29, 3
    %p330 = por %p328, %p329
    %p332 = scmp.ne.s32.totalorder %s317, %s331
    %p333 = scmp.eq.s32.totalorder %s29, 0
    %p334 = por %p332, %p333
    %s336 = sadd.s32 %s335, 1
    %p339 = scmp.eq.s32.totalorder %s23, 3
    %p340 = scmp.ne.s32.totalorder %s335, %s337
    %p341 = scmp.eq.s32.totalorder %s23, 0
    %p342 = por %p340, %p341
    %p343 = scmp.ne.s32.totalorder %s335, %s337
    %p344 = scmp.eq.s32.totalorder %s28, 3
    %p345 = por %p343, %p344
    %p346 = scmp.ne.s32.totalorder %s337, %s338
    %p347 = scmp.eq.s32.totalorder %s28, 0
    %p348 = por %p346, %p347
    %p349 = scmp.ne.s32.totalorder %s337, %s338
    %p350 = scmp.eq.s32.totalorder %s29, 3
    %p351 = por %p349, %p350
    %p353 = scmp.ne.s32.totalorder %s338, %s352
    %p354 = scmp.eq.s32.totalorder %s29, 0
    %p355 = por %p353, %p354
    %s356 = ssub.s32 %s23, %s30
    %p357 = scmp.eq.s32.totalorder %s356, 0
    %s359 = sadd.s32 %s358, 1
    %s360 = scalar_select %p357, %s358, %s359
    %p363 = pneg %p357
    %p364 = scmp.eq.s32.totalorder %s23, 3
    %p365 = por %p363, %p364
    %p366 = scmp.ne.s32.totalorder %s358, %s361
    %p367 = scmp.eq.s32.totalorder %s23, 0
    %p368 = por %p366, %p367
    %p369 = scmp.ne.s32.totalorder %s358, %s361
    %p370 = scmp.eq.s32.totalorder %s28, 3
    %p371 = por %p369, %p370
    %p372 = scmp.ne.s32.totalorder %s361, %s362
    %p373 = scmp.eq.s32.totalorder %s28, 0
    %p374 = por %p372, %p373
    %p375 = scmp.ne.s32.totalorder %s361, %s362
    %p376 = scmp.eq.s32.totalorder %s29, 3
    %p377 = por %p375, %p376
    %p379 = scmp.ne.s32.totalorder %s362, %s378
    %p380 = scmp.eq.s32.totalorder %s29, 0
    %p381 = por %p379, %p380
    %s382 = ssub.s32 %s23, %s30
    %p383 = scmp.eq.s32.totalorder %s382, 0
    %s385 = sadd.s32 %s384, 1
    %s386 = scalar_select %p383, %s384, %s385
    %p389 = pneg %p383
    %p390 = scmp.eq.s32.totalorder %s23, 3
    %p391 = por %p389, %p390
    %p392 = scmp.ne.s32.totalorder %s384, %s387
    %p393 = scmp.eq.s32.totalorder %s23, 0
    %p394 = por %p392, %p393
    %p395 = scmp.ne.s32.totalorder %s384, %s387
    %p396 = scmp.eq.s32.totalorder %s28, 3
    %p397 = por %p395, %p396
    %p398 = scmp.ne.s32.totalorder %s387, %s388
    %p399 = scmp.eq.s32.totalorder %s28, 0
    %p400 = por %p398, %p399
    %p401 = scmp.ne.s32.totalorder %s387, %s388
    %p402 = scmp.eq.s32.totalorder %s29, 3
    %p403 = por %p401, %p402
    %p405 = scmp.ne.s32.totalorder %s388, %s404
    %p406 = scmp.eq.s32.totalorder %s29, 0
    %p407 = por %p405, %p406
    %p408 = scmp.le.s32.totalorder 1, %s23
    %p409 = scmp.lt.s32.totalorder %s23, 5
    %p410 = pnand %p408, %p409
    %p411 = pneg %p410
    // Predicated region
    $region9: #{ff_model_forward.1} parent=5 // pred_check
      _
    $region10: #{ff_model_forward.1} parent=5 // pred_check_branch
      %413 = sbr.rel (%p410) target = $region12
    $region11: #{ff_model_forward.1} parent=5 // pred_region
      %s414 = ssub.s32 %s23, 1
      // Predicated region
      $region13: #{ff_model_forward.1} parent=11 // pred_check
        %p415 = pneg %p96
      $region14: #{ff_model_forward.1} parent=11 // pred_check_branch
        %417 = sbr.rel (%p415) target = $region16
      $region15: #{ff_model_forward.1} parent=11 // pred_region
        _
      $region16: #{ff_model_forward.1} parent=11 // pred_fallthru
        _
      // Predicated region
      $region17: #{ff_model_forward.1} parent=11 // pred_check
        %p418 = pneg %p117
      $region18: #{ff_model_forward.1} parent=11 // pred_check_branch
        %420 = sbr.rel (%p418) target = $region20
      $region19: #{ff_model_forward.1} parent=11 // pred_region
        _
      $region20: #{ff_model_forward.1} parent=11 // pred_fallthru
        _
      // Predicated region
      $region21: #{ff_model_forward.1} parent=11 // pred_check
        %p421 = pneg %p138
      $region22: #{ff_model_forward.1} parent=11 // pred_check_branch
        %423 = sbr.rel (%p421) target = $region24
      $region23: #{ff_model_forward.1} parent=11 // pred_region
        _
      $region24: #{ff_model_forward.1} parent=11 // pred_fallthru
        _
      // Predicated region
      $region25: #{ff_model_forward.1} parent=11 // pred_check
        %p424 = pneg %p159
      $region26: #{ff_model_forward.1} parent=11 // pred_check_branch
        %426 = sbr.rel (%p424) target = $region28
      $region27: #{ff_model_forward.1} parent=11 // pred_region
        _
      $region28: #{ff_model_forward.1} parent=11 // pred_fallthru
        _
      // Predicated region
      $region29: #{ff_model_forward.1} parent=11 // pred_check
        %p427 = pneg %p180
      $region30: #{ff_model_forward.1} parent=11 // pred_check_branch
        %429 = sbr.rel (%p427) target = $region32
      $region31: #{ff_model_forward.1} parent=11 // pred_region
        _
      $region32: #{ff_model_forward.1} parent=11 // pred_fallthru
        _
      // Predicated region
      $region33: #{ff_model_forward.1} parent=11 // pred_check
        %p430 = pneg %p201
      $region34: #{ff_model_forward.1} parent=11 // pred_check_branch
        %432 = sbr.rel (%p430) target = $region36
      $region35: #{ff_model_forward.1} parent=11 // pred_region
        _
      $region36: #{ff_model_forward.1} parent=11 // pred_fallthru
        _
      // Predicated region
      $region37: #{ff_model_forward.1} parent=11 // pred_check
        %p433 = pneg %p222
      $region38: #{ff_model_forward.1} parent=11 // pred_check_branch
        %435 = sbr.rel (%p433) target = $region40
      $region39: #{ff_model_forward.1} parent=11 // pred_region
        _
      $region40: #{ff_model_forward.1} parent=11 // pred_fallthru
        _
      // Predicated region
      $region41: #{ff_model_forward.1} parent=11 // pred_check
        %p436 = pneg %p243
      $region42: #{ff_model_forward.1} parent=11 // pred_check_branch
        %438 = sbr.rel (%p436) target = $region44
      $region43: #{ff_model_forward.1} parent=11 // pred_region
        _
      $region44: #{ff_model_forward.1} parent=11 // pred_fallthru
        _
      // Predicated region
      $region45: #{ff_model_forward.1} parent=11 // pred_check
        %p439 = pneg %p264
      $region46: #{ff_model_forward.1} parent=11 // pred_check_branch
        %441 = sbr.rel (%p439) target = $region48
      $region47: #{ff_model_forward.1} parent=11 // pred_region
        _
      $region48: #{ff_model_forward.1} parent=11 // pred_fallthru
        _
      // Predicated region
      $region49: #{ff_model_forward.1} parent=11 // pred_check
        %p442 = pneg %p285
      $region50: #{ff_model_forward.1} parent=11 // pred_check_branch
        %444 = sbr.rel (%p442) target = $region52
      $region51: #{ff_model_forward.1} parent=11 // pred_region
        _
      $region52: #{ff_model_forward.1} parent=11 // pred_fallthru
        _
      // Predicated region
      $region53: #{ff_model_forward.1} parent=11 // pred_check
        %p445 = pneg %p306
      $region54: #{ff_model_forward.1} parent=11 // pred_check_branch
        %447 = sbr.rel (%p445) target = $region56
      $region55: #{ff_model_forward.1} parent=11 // pred_region
        _
      $region56: #{ff_model_forward.1} parent=11 // pred_fallthru
        _
      // Predicated region
      $region57: #{ff_model_forward.1} parent=11 // pred_check
        %p448 = pneg %p327
      $region58: #{ff_model_forward.1} parent=11 // pred_check_branch
        %450 = sbr.rel (%p448) target = $region60
      $region59: #{ff_model_forward.1} parent=11 // pred_region
        _
      $region60: #{ff_model_forward.1} parent=11 // pred_fallthru
        _
      // Predicated region
      $region61: #{ff_model_forward.1} parent=11 // pred_check
        %p451 = pneg %p348
      $region62: #{ff_model_forward.1} parent=11 // pred_check_branch
        %453 = sbr.rel (%p451) target = $region64
      $region63: #{ff_model_forward.1} parent=11 // pred_region
        _
      $region64: #{ff_model_forward.1} parent=11 // pred_fallthru
        _
    $region12: #{ff_model_forward.1} parent=5 // pred_fallthru
      _
    %p454 = scmp.lt.s32.totalorder %s23, 4
    // Predicated region
    $region65: #{ff_model_forward.1} parent=5 // pred_check
      %p455 = pneg %p454
    $region66: #{ff_model_forward.1} parent=5 // pred_check_branch
      %457 = sbr.rel (%p455) target = $region68
    $region67: #{ff_model_forward.1} parent=5 // pred_region
      // Predicated region
      $region69: #{ff_model_forward.1} parent=67 // pred_check
        %p458 = pneg %p43
      $region70: #{ff_model_forward.1} parent=67 // pred_check_branch
        %460 = sbr.rel (%p458) target = $region72
      $region71: #{ff_model_forward.1} parent=67 // pred_region
        %s461 = smul.u32 2, %s23
        %p462 = scmp.lt.s32.totalorder %s461, 7
        %s463 = scalar_select %p462, %s461, 7
        %s464 = smul.addr %s463, 8
        %s465 = scalar_lea.vmem %s0, %s464
        %s466 = smul.u32 2, %s23
      $region72: #{ff_model_forward.1} parent=67 // pred_fallthru
        _
      // Predicated region
      $region73: #{ff_model_forward.1} parent=67 // pred_check
        %p467 = pneg %p69
      $region74: #{ff_model_forward.1} parent=67 // pred_check_branch
        %469 = sbr.rel (%p467) target = $region76
      $region75: #{ff_model_forward.1} parent=67 // pred_region
        %s470 = smul.u32 2, %s23
        %p471 = scmp.lt.s32.totalorder %s470, 7
        %s472 = scalar_select %p471, %s470, 7
        %s473 = smul.addr %s472, 8
        %s474 = scalar_lea.vmem %s1, %s473
        %s475 = smul.u32 2, %s23
      $region76: #{ff_model_forward.1} parent=67 // pred_fallthru
        _
    $region68: #{ff_model_forward.1} parent=5 // pred_fallthru
      _
    %p476 = scmp.le.s32.totalorder 1, %s23
    %p477 = scmp.lt.s32.totalorder %s23, 5
    %p478 = pnand %p476, %p477
    %p479 = pneg %p478
    // Predicated region
    $region77: #{ff_model_forward.1} parent=5 // pred_check
      _
    $region78: #{ff_model_forward.1} parent=5 // pred_check_branch
      %481 = sbr.rel (%p478) target = $region80
    $region79: #{ff_model_forward.1} parent=5 // pred_region
      %s482 = ssub.s32 %s23, 1
      %s483 = smul.u32 2, %s28
      %p484 = scmp.lt.s32.totalorder %s483, 7
      %s485 = scalar_select %p484, %s483, 7
      %s486 = smul.addr %s485, 8
      %s487 = scalar_lea.vmem %s0, %s486
      %p488 = pneg %p49
      %p489 = pneg %p46
      %s490 = smul.u32 2, %s28
      %p491 = scmp.lt.s32.totalorder %s490, 7
      %s492 = scalar_select %p491, %s490, 7
      %s493 = smul.addr %s492, 8
      %s494 = scalar_lea.vmem %s1, %s493
      %p495 = pneg %p75
      %p496 = pneg %p72
      %p497 = pneg %p96
      %p498 = pneg %p93
      %p499 = pneg %p117
      %p500 = pneg %p114
      %p501 = pneg %p138
      %p502 = pneg %p135
      %p503 = pneg %p159
      %p504 = pneg %p156
      %p505 = pneg %p180
      %p506 = pneg %p177
      %p507 = pneg %p201
      %p508 = pneg %p198
      %p509 = pneg %p222
      %p510 = pneg %p219
      %p511 = pneg %p243
      %p512 = pneg %p240
      %p513 = pneg %p264
      %p514 = pneg %p261
      %p515 = pneg %p285
      %p516 = pneg %p282
      %p517 = pneg %p306
      %p518 = pneg %p303
      %p519 = pneg %p327
      %p520 = pneg %p324
      %p521 = pneg %p348
      %p522 = pneg %p345
      %p523 = pneg %p374
      %p524 = pneg %p371
      %s525 = smul.u32 2, %s28
      %p526 = scmp.lt.s32.totalorder %s525, 7
      %s527 = scalar_select %p526, %s525, 7
      %s528 = smul.addr %s527, 8
      %s529 = scalar_lea.vmem %s15, %s528
      %p530 = pneg %p400
      %p531 = pneg %p397
      %s532 = smul.u32 2, %s28
      %p533 = scmp.lt.s32.totalorder %s532, 7
      %s534 = scalar_select %p533, %s532, 7
      %s535 = smul.addr %s534, 8
      %s536 = scalar_lea.vmem %s16, %s535
      %s537 = smul.u32 2, %s28
      %p538 = scmp.lt.s32.totalorder %s537, 7
      %s539 = scalar_select %p538, %s537, 7
      %s540 = smul.addr %s539, 8
      %s541 = scalar_lea.vmem %s0, %s540
      %s542 = smul.u32 2, %s28
      %s543 = smul.u32 2, %s28
      %p544 = scmp.lt.s32.totalorder %s543, 7
      %s545 = scalar_select %p544, %s543, 7
      %s546 = smul.addr %s545, 8
      %s547 = scalar_lea.vmem %s1, %s546
      %s548 = smul.u32 2, %s28
      %s549 = smul.u32 2, %s28
      %p550 = scmp.lt.s32.totalorder %s549, 7
      %s551 = scalar_select %p550, %s549, 7
      %s552 = smul.addr %s551, 8
      %s553 = scalar_lea.vmem %s15, %s552
      %s554 = smul.u32 2, %s28
      %s555 = smul.u32 2, %s28
      %p556 = scmp.lt.s32.totalorder %s555, 7
      %s557 = scalar_select %p556, %s555, 7
      %s558 = smul.addr %s557, 8
      %s559 = scalar_lea.vmem %s16, %s558
      %s560 = smul.u32 2, %s28
      %v561 = vld [vmem:[%s541] sm:$0xff]
      %v562 = vld [vmem:[%s541 + $0x8] sm:$0xff]
      %v563 = vld [vmem:[%s547] sm:$0xff]
      %v564 = vld [vmem:[%s547 + $0x8] sm:$0xff]
      %v565 = vld [vmem:[%s3] sm:$0x1]
      %v566 = vadd.f32 %v565, 1e-08
      %v567 = vrcp.pop %v566
      %v568 = vmul.f32 1.0, %v567
      %v569 = vld [vmem:[%s5] sm:$0x1]
      %v570 = vadd.f32 %v569, 1e-08
      %v571 = vrcp.pop %v570
      %v572 = vmul.f32 1.0, %v571
      %v573 = vld [vmem:[%s2] sm:$0x1]
      %v575 = vlaneseq
      %v576 = vshrl.u32 %v575, 7
      %v577 = vsub.s32 0, %v576
      %v578 = vrot.slane %v573, %v577
      %v580 = vsub.f32 %v561, %v578
      %v581 = vsub.f32 %v562, %v578
      %v583 = vlaneseq
      %v584 = vshrl.u32 %v583, 7
      %v585 = vsub.s32 0, %v584
      %v586 = vrot.slane %v568, %v585
      %v588 = vmul.f32 %v580, %v586
      %v589 = vmul.f32 %v581, %v586
      %v590 = vld [vmem:[%s4] sm:$0x1]
      %v592 = vlaneseq
      %v593 = vshrl.u32 %v592, 7
      %v594 = vsub.s32 0, %v593
      %v595 = vrot.slane %v590, %v594
      %v597 = vsub.f32 %v563, %v595
      %v598 = vsub.f32 %v564, %v595
      %v600 = vlaneseq
      %v601 = vshrl.u32 %v600, 7
      %v602 = vsub.s32 0, %v601
      %v603 = vrot.slane %v572, %v602
      %v605 = vmul.f32 %v597, %v603
      %v606 = vmul.f32 %v598, %v603
      %v607 = vld [vmem:[%s8] sm:$0xff]
      %v608 = vld [vmem:[%s8 + $0x8] sm:$0xff]
      %v609 = vld [vmem:[%s8 + $0x10] sm:$0xff]
      %v610 = vld [vmem:[%s8 + $0x18] sm:$0xff]
      %v611 = vld [vmem:[%s8 + $0x20] sm:$0xff]
      %v612 = vld [vmem:[%s8 + $0x28] sm:$0xff]
      %v613 = vld [vmem:[%s8 + $0x30] sm:$0xff]
      %v614 = vld [vmem:[%s8 + $0x38] sm:$0xff]
      %v615 = vld [vmem:[%s8 + $0x40] sm:$0xff]
      %v616 = vld [vmem:[%s8 + $0x48] sm:$0xff]
      %v617 = vld [vmem:[%s8 + $0x50] sm:$0xff]
      %v618 = vld [vmem:[%s8 + $0x58] sm:$0xff]
      %v619 = vld [vmem:[%s8 + $0x60] sm:$0xff]
      %v620 = vld [vmem:[%s8 + $0x68] sm:$0xff]
      %v621 = vld [vmem:[%s8 + $0x70] sm:$0xff]
      %v622 = vld [vmem:[%s8 + $0x78] sm:$0xff]
      %v623 = vld [vmem:[%s8 + $0x80] sm:$0xff]
      %v624 = vld [vmem:[%s8 + $0x88] sm:$0xff]
      %v625 = vld [vmem:[%s8 + $0x90] sm:$0xff]
      %v626 = vld [vmem:[%s8 + $0x98] sm:$0xff]
      %v627 = vld [vmem:[%s8 + $0xa0] sm:$0xff]
      %v628 = vld [vmem:[%s8 + $0xa8] sm:$0xff]
      %v629 = vld [vmem:[%s8 + $0xb0] sm:$0xff]
      %v630 = vld [vmem:[%s8 + $0xb8] sm:$0xff]
      %v631 = vld [vmem:[%s8 + $0xc0] sm:$0xff]
      %v632 = vld [vmem:[%s8 + $0xc8] sm:$0xff]
      %v633 = vld [vmem:[%s8 + $0xd0] sm:$0xff]
      %v634 = vld [vmem:[%s8 + $0xd8] sm:$0xff]
      %v635 = vld [vmem:[%s8 + $0xe0] sm:$0xff]
      %v636 = vld [vmem:[%s8 + $0xe8] sm:$0xff]
      %v637 = vld [vmem:[%s8 + $0xf0] sm:$0xff]
      %v638 = vld [vmem:[%s8 + $0xf8] sm:$0xff]
      %v639 = vld [vmem:[%s9] sm:$0xff]
      %v640 = vld [vmem:[%s9 + $0x8] sm:$0xff]
      %v641 = vld [vmem:[%s9 + $0x10] sm:$0xff]
      %v642 = vld [vmem:[%s9 + $0x18] sm:$0xff]
      %v643 = vld [vmem:[%s9 + $0x20] sm:$0xff]
      %v644 = vld [vmem:[%s9 + $0x28] sm:$0xff]
      %v645 = vld [vmem:[%s9 + $0x30] sm:$0xff]
      %v646 = vld [vmem:[%s9 + $0x38] sm:$0xff]
      %v647 = vld [vmem:[%s9 + $0x40] sm:$0xff]
      %v648 = vld [vmem:[%s9 + $0x48] sm:$0xff]
      %v649 = vld [vmem:[%s9 + $0x50] sm:$0xff]
      %v650 = vld [vmem:[%s9 + $0x58] sm:$0xff]
      %v651 = vld [vmem:[%s9 + $0x60] sm:$0xff]
      %v652 = vld [vmem:[%s9 + $0x68] sm:$0xff]
      %v653 = vld [vmem:[%s9 + $0x70] sm:$0xff]
      %v654 = vld [vmem:[%s9 + $0x78] sm:$0xff]
      %vm655 = vcmask 523264
      %v657 = vsel %vm655, %v605, 0
      %v660 = vsel %vm655, %v606, 0
      %662 = vmatprep.subr.mxu0 %v640
      %663 = vmatpush1.msra.mxu0 %v639
      %664 = vmatprep.subr.mxu0 %v642
      %665 = vmatpush1.msra.mxu0 %v641
      %666 = vmatprep.subr.mxu0 %v644
      %667 = vmatpush1.msra.mxu0 %v643
      %668 = vmatprep.subr.mxu0 %v646
      %669 = vmatpush1.msra.mxu0 %v645
      %670 = vmatprep.subr.mxu0 %v648
      %671 = vmatpush1.msra.mxu0 %v647
      %672 = vmatprep.subr.mxu0 %v650
      %673 = vmatpush1.msra.mxu0 %v649
      %674 = vmatprep.subr.mxu0 %v652
      %675 = vmatpush1.msra.mxu0 %v651
      %676 = vmatprep.subr.mxu0 %v654
      %677 = vmatpush1.msra.mxu0 %v653
      %678 = vmatprep.subr.mxu0 0.0
      %679 = vmatpush1.msra.mxu0 0.0
      %680 = vmatprep.subr.mxu0 0.0
      %681 = vmatpush1.msra.mxu0 0.0
      %682 = vmatprep.subr.mxu0 0.0
      %683 = vmatpush1.msra.mxu0 0.0
      %684 = vmatprep.subr.mxu0 0.0
      %685 = vmatpush1.msra.mxu0 0.0
      %686 = vmatprep.subr.mxu0 0.0
      %687 = vmatpush1.msra.mxu0 0.0
      %688 = vmatprep.subr.mxu0 0.0
      %689 = vmatpush1.msra.mxu0 0.0
      %690 = vmatprep.subr.mxu0 0.0
      %691 = vmatpush1.msra.mxu0 0.0
      %692 = vmatprep.subr.mxu0 0.0
      %693 = vmatpush1.msra.mxu0 0.0
      %694 = vmatprep.subr.mxu0 0.0
      %695 = vmatpush1.msra.mxu0 0.0
      %696 = vmatprep.subr.mxu0 0.0
      %697 = vmatpush1.msra.mxu0 0.0
      %698 = vmatprep.subr.mxu0 0.0
      %699 = vmatpush1.msra.mxu0 0.0
      %700 = vmatprep.subr.mxu0 0.0
      %701 = vmatpush1.msra.mxu0 0.0
      %702 = vmatprep.subr.mxu0 0.0
      %703 = vmatpush1.msra.mxu0 0.0
      %704 = vmatprep.subr.mxu0 0.0
      %705 = vmatpush1.msra.mxu0 0.0
      %706 = vmatprep.subr.mxu0 0.0
      %707 = vmatpush1.msra.mxu0 0.0
      %708 = vmatprep.subr.mxu0 0.0
      %709 = vmatpush1.msra.mxu0 0.0
      %710 = vmatprep.subr.mxu0 0.0
      %711 = vmatpush1.msra.mxu0 0.0
      %712 = vmatprep.subr.mxu0 0.0
      %713 = vmatpush1.msra.mxu0 0.0
      %714 = vmatprep.subr.mxu0 0.0
      %715 = vmatpush1.msra.mxu0 0.0
      %716 = vmatprep.subr.mxu0 0.0
      %717 = vmatpush1.msra.mxu0 0.0
      %718 = vmatprep.subr.mxu0 0.0
      %719 = vmatpush1.msra.mxu0 0.0
      %720 = vmatprep.subr.mxu0 0.0
      %721 = vmatpush1.msra.mxu0 0.0
      %722 = vmatprep.subr.mxu0 0.0
      %723 = vmatpush1.msra.mxu0 0.0
      %724 = vmatprep.subr.mxu0 0.0
      %725 = vmatpush1.msra.mxu0 0.0
      %726 = vmatprep.mubr.f32.mxu0 0.0
      %727 = vmatmul.mubr.f32.gmra.mrb[0].mxu0 %v657
      %v728 = vpop.f32.mrb[0].mxu0
      %v729 = vadd.f32 0.0, %v728
      %v730 = vpop.f32.mrb[0].mxu0
      %v731 = vadd.f32 0.0, %v730
      %732 = vmatprep.mubr.f32.mxu0 0.0
      %733 = vmatmul.mubr.f32.gmra.mrb[0].mxu0 %v660
      %v734 = vpop.f32.mrb[0].mxu0
      %v735 = vadd.f32 0.0, %v734
      %v736 = vpop.f32.mrb[0].mxu0
      %v737 = vadd.f32 0.0, %v736
      %738 = vdwg.mxu0
      %739 = vmatprep.subr.mxu0 %v608
      %740 = vmatpush1.msra.mxu0 %v607
      %741 = vmatprep.subr.mxu0 %v610
      %742 = vmatpush1.msra.mxu0 %v609
      %743 = vmatprep.subr.mxu0 %v612
      %744 = vmatpush1.msra.mxu0 %v611
      %745 = vmatprep.subr.mxu0 %v614
      %746 = vmatpush1.msra.mxu0 %v613
      %747 = vmatprep.subr.mxu0 %v616
      %748 = vmatpush1.msra.mxu0 %v615
      %749 = vmatprep.subr.mxu0 %v618
      %750 = vmatpush1.msra.mxu0 %v617
      %751 = vmatprep.subr.mxu0 %v620
      %752 = vmatpush1.msra.mxu0 %v619
      %753 = vmatprep.subr.mxu0 %v622
      %754 = vmatpush1.msra.mxu0 %v621
      %755 = vmatprep.subr.mxu0 %v624
      %756 = vmatpush1.msra.mxu0 %v623
      %757 = vmatprep.subr.mxu0 %v626
      %758 = vmatpush1.msra.mxu0 %v625
      %759 = vmatprep.subr.mxu0 %v628
      %760 = vmatpush1.msra.mxu0 %v627
      %761 = vmatprep.subr.mxu0 %v630
      %762 = vmatpush1.msra.mxu0 %v629
      %763 = vmatprep.subr.mxu0 %v632
      %764 = vmatpush1.msra.mxu0 %v631
      %765 = vmatprep.subr.mxu0 %v634
      %766 = vmatpush1.msra.mxu0 %v633
      %767 = vmatprep.subr.mxu0 %v636
      %768 = vmatpush1.msra.mxu0 %v635
      %769 = vmatprep.subr.mxu0 %v638
      %770 = vmatpush1.msra.mxu0 %v637
      %771 = vmatprep.subr.mxu0 0.0
      %772 = vmatpush1.msra.mxu0 0.0
      %773 = vmatprep.subr.mxu0 0.0
      %774 = vmatpush1.msra.mxu0 0.0
      %775 = vmatprep.subr.mxu0 0.0
      %776 = vmatpush1.msra.mxu0 0.0
      %777 = vmatprep.subr.mxu0 0.0
      %778 = vmatpush1.msra.mxu0 0.0
      %779 = vmatprep.subr.mxu0 0.0
      %780 = vmatpush1.msra.mxu0 0.0
      %781 = vmatprep.subr.mxu0 0.0
      %782 = vmatpush1.msra.mxu0 0.0
      %783 = vmatprep.subr.mxu0 0.0
      %784 = vmatpush1.msra.mxu0 0.0
      %785 = vmatprep.subr.mxu0 0.0
      %786 = vmatpush1.msra.mxu0 0.0
      %787 = vmatprep.subr.mxu0 0.0
      %788 = vmatpush1.msra.mxu0 0.0
      %789 = vmatprep.subr.mxu0 0.0
      %790 = vmatpush1.msra.mxu0 0.0
      %791 = vmatprep.subr.mxu0 0.0
      %792 = vmatpush1.msra.mxu0 0.0
      %793 = vmatprep.subr.mxu0 0.0
      %794 = vmatpush1.msra.mxu0 0.0
      %795 = vmatprep.subr.mxu0 0.0
      %796 = vmatpush1.msra.mxu0 0.0
      %797 = vmatprep.subr.mxu0 0.0
      %798 = vmatpush1.msra.mxu0 0.0
      %799 = vmatprep.subr.mxu0 0.0
      %800 = vmatpush1.msra.mxu0 0.0
      %801 = vmatprep.subr.mxu0 0.0
      %802 = vmatpush1.msra.mxu0 0.0
      %803 = vmatprep.mubr.f32.mxu0 0.0
      %804 = vmatmul.mubr.f32.gmra.mrb[0].mxu0 %v588
      %v805 = vpop.f32.mrb[0].mxu0
      %v806 = vadd.f32 %v729, %v805
      %v807 = vpop.f32.mrb[0].mxu0
      %v808 = vadd.f32 %v731, %v807
      %809 = vmatprep.mubr.f32.mxu0 0.0
      %810 = vmatmul.mubr.f32.gmra.mrb[0].mxu0 %v589
      %v811 = vpop.f32.mrb[0].mxu0
      %v812 = vadd.f32 %v735, %v811
      %v813 = vpop.f32.mrb[0].mxu0
      %v814 = vadd.f32 %v737, %v813
      %815 = vdwg.mxu0
      %v816 = vld [vmem:[%s10] sm:$0x3]
      %v818 = vlaneseq
      %v819 = vshrl.u32 %v818, 7
      %v820 = vsub.s32 0, %v819
      %v821 = vrot.slane %v816, %v820
      %v822 = vlaneseq
      %v823 = vshrl.u32 %v822, 7
      %v824 = vsub.s32 1, %v823
      %v825 = vrot.slane %v816, %v824
      %v828 = vadd.f32 %v806, %v821
      %v829 = vadd.f32 %v808, %v825
      %v830 = vadd.f32 %v812, %v821
      %v831 = vadd.f32 %v814, %v825
      %v832 = vtanh.pop %v828
      %v833 = vtanh.pop %v829
      %v834 = vtanh.pop %v830
      %v835 = vtanh.pop %v831
      %v836 = vld [vmem:[%s11] sm:$0xff]
      %v837 = vld [vmem:[%s11 + $0x8] sm:$0xff]
      %v838 = vld [vmem:[%s11 + $0x10] sm:$0xff]
      %v839 = vld [vmem:[%s11 + $0x18] sm:$0xff]
      %v840 = vld [vmem:[%s11 + $0x20] sm:$0xff]
      %v841 = vld [vmem:[%s11 + $0x28] sm:$0xff]
      %v842 = vld [vmem:[%s11 + $0x30] sm:$0xff]
      %v843 = vld [vmem:[%s11 + $0x38] sm:$0xff]
      %v844 = vld [vmem:[%s11 + $0x40] sm:$0xff]
      %v845 = vld [vmem:[%s11 + $0x48] sm:$0xff]
      %v846 = vld [vmem:[%s11 + $0x50] sm:$0xff]
      %v847 = vld [vmem:[%s11 + $0x58] sm:$0xff]
      %v848 = vld [vmem:[%s11 + $0x60] sm:$0xff]
      %v849 = vld [vmem:[%s11 + $0x68] sm:$0xff]
      %v850 = vld [vmem:[%s11 + $0x70] sm:$0xff]
      %v851 = vld [vmem:[%s11 + $0x78] sm:$0xff]
      %v852 = vld [vmem:[%s11 + $0x80] sm:$0xff]
      %v853 = vld [vmem:[%s11 + $0x88] sm:$0xff]
      %v854 = vld [vmem:[%s11 + $0x90] sm:$0xff]
      %v855 = vld [vmem:[%s11 + $0x98] sm:$0xff]
      %v856 = vld [vmem:[%s11 + $0xa0] sm:$0xff]
      %v857 = vld [vmem:[%s11 + $0xa8] sm:$0xff]
      %v858 = vld [vmem:[%s11 + $0xb0] sm:$0xff]
      %v859 = vld [vmem:[%s11 + $0xb8] sm:$0xff]
      %v860 = vld [vmem:[%s11 + $0xc0] sm:$0xff]
      %v861 = vld [vmem:[%s11 + $0xc8] sm:$0xff]
      %v862 = vld [vmem:[%s11 + $0xd0] sm:$0xff]
      %v863 = vld [vmem:[%s11 + $0xd8] sm:$0xff]
      %v864 = vld [vmem:[%s11 + $0xe0] sm:$0xff]
      %v865 = vld [vmem:[%s11 + $0xe8] sm:$0xff]
      %v866 = vld [vmem:[%s11 + $0xf0] sm:$0xff]
      %v867 = vld [vmem:[%s11 + $0xf8] sm:$0xff]
      %v868 = vld [vmem:[%s11 + $0x100] sm:$0xff]
      %v869 = vld [vmem:[%s11 + $0x108] sm:$0xff]
      %v870 = vld [vmem:[%s11 + $0x110] sm:$0xff]
      %v871 = vld [vmem:[%s11 + $0x118] sm:$0xff]
      %v872 = vld [vmem:[%s11 + $0x120] sm:$0xff]
      %v873 = vld [vmem:[%s11 + $0x128] sm:$0xff]
      %v874 = vld [vmem:[%s11 + $0x130] sm:$0xff]
      %v875 = vld [vmem:[%s11 + $0x138] sm:$0xff]
      %v876 = vld [vmem:[%s11 + $0x140] sm:$0xff]
      %v877 = vld [vmem:[%s11 + $0x148] sm:$0xff]
      %v878 = vld [vmem:[%s11 + $0x150] sm:$0xff]
      %v879 = vld [vmem:[%s11 + $0x158] sm:$0xff]
      %v880 = vld [vmem:[%s11 + $0x160] sm:$0xff]
      %v881 = vld [vmem:[%s11 + $0x168] sm:$0xff]
      %v882 = vld [vmem:[%s11 + $0x170] sm:$0xff]
      %v883 = vld [vmem:[%s11 + $0x178] sm:$0xff]
      %v884 = vld [vmem:[%s11 + $0x180] sm:$0xff]
      %v885 = vld [vmem:[%s11 + $0x188] sm:$0xff]
      %v886 = vld [vmem:[%s11 + $0x190] sm:$0xff]
      %v887 = vld [vmem:[%s11 + $0x198] sm:$0xff]
      %v888 = vld [vmem:[%s11 + $0x1a0] sm:$0xff]
      %v889 = vld [vmem:[%s11 + $0x1a8] sm:$0xff]
      %v890 = vld [vmem:[%s11 + $0x1b0] sm:$0xff]
      %v891 = vld [vmem:[%s11 + $0x1b8] sm:$0xff]
      %v892 = vld [vmem:[%s11 + $0x1c0] sm:$0xff]
      %v893 = vld [vmem:[%s11 + $0x1c8] sm:$0xff]
      %v894 = vld [vmem:[%s11 + $0x1d0] sm:$0xff]
      %v895 = vld [vmem:[%s11 + $0x1d8] sm:$0xff]
      %v896 = vld [vmem:[%s11 + $0x1e0] sm:$0xff]
      %v897 = vld [vmem:[%s11 + $0x1e8] sm:$0xff]
      %v898 = vld [vmem:[%s11 + $0x1f0] sm:$0xff]
      %v899 = vld [vmem:[%s11 + $0x1f8] sm:$0xff]
      %v900 = vld [vmem:[%s12] sm:$0x3]
      %v902 = vlaneseq
      %v903 = vshrl.u32 %v902, 7
      %v904 = vsub.s32 0, %v903
      %v905 = vrot.slane %v900, %v904
      %v906 = vlaneseq
      %v907 = vshrl.u32 %v906, 7
      %v908 = vsub.s32 1, %v907
      %v909 = vrot.slane %v900, %v908
      %912 = vmatprep.subr.mxu0 %v837
      %913 = vmatpush1.msra.mxu0 %v836
      %914 = vmatprep.subr.mxu0 %v839
      %915 = vmatpush1.msra.mxu0 %v838
      %916 = vmatprep.subr.mxu0 %v841
      %917 = vmatpush1.msra.mxu0 %v840
      %918 = vmatprep.subr.mxu0 %v843
      %919 = vmatpush1.msra.mxu0 %v842
      %920 = vmatprep.subr.mxu0 %v845
      %921 = vmatpush1.msra.mxu0 %v844
      %922 = vmatprep.subr.mxu0 %v847
      %923 = vmatpush1.msra.mxu0 %v846
      %924 = vmatprep.subr.mxu0 %v849
      %925 = vmatpush1.msra.mxu0 %v848
      %926 = vmatprep.subr.mxu0 %v851
      %927 = vmatpush1.msra.mxu0 %v850
      %928 = vmatprep.subr.mxu0 %v853
      %929 = vmatpush1.msra.mxu0 %v852
      %930 = vmatprep.subr.mxu0 %v855
      %931 = vmatpush1.msra.mxu0 %v854
      %932 = vmatprep.subr.mxu0 %v857
      %933 = vmatpush1.msra.mxu0 %v856
      %934 = vmatprep.subr.mxu0 %v859
      %935 = vmatpush1.msra.mxu0 %v858
      %936 = vmatprep.subr.mxu0 %v861
      %937 = vmatpush1.msra.mxu0 %v860
      %938 = vmatprep.subr.mxu0 %v863
      %939 = vmatpush1.msra.mxu0 %v862
      %940 = vmatprep.subr.mxu0 %v865
      %941 = vmatpush1.msra.mxu0 %v864
      %942 = vmatprep.subr.mxu0 %v867
      %943 = vmatpush1.msra.mxu0 %v866
      %944 = vmatprep.subr.mxu0 %v869
      %945 = vmatpush1.msra.mxu0 %v868
      %946 = vmatprep.subr.mxu0 %v871
      %947 = vmatpush1.msra.mxu0 %v870
      %948 = vmatprep.subr.mxu0 %v873
      %949 = vmatpush1.msra.mxu0 %v872
      %950 = vmatprep.subr.mxu0 %v875
      %951 = vmatpush1.msra.mxu0 %v874
      %952 = vmatprep.subr.mxu0 %v877
      %953 = vmatpush1.msra.mxu0 %v876
      %954 = vmatprep.subr.mxu0 %v879
      %955 = vmatpush1.msra.mxu0 %v878
      %956 = vmatprep.subr.mxu0 %v881
      %957 = vmatpush1.msra.mxu0 %v880
      %958 = vmatprep.subr.mxu0 %v883
      %959 = vmatpush1.msra.mxu0 %v882
      %960 = vmatprep.subr.mxu0 %v885
      %961 = vmatpush1.msra.mxu0 %v884
      %962 = vmatprep.subr.mxu0 %v887
      %963 = vmatpush1.msra.mxu0 %v886
      %964 = vmatprep.subr.mxu0 %v889
      %965 = vmatpush1.msra.mxu0 %v888
      %966 = vmatprep.subr.mxu0 %v891
      %967 = vmatpush1.msra.mxu0 %v890
      %968 = vmatprep.subr.mxu0 %v893
      %969 = vmatpush1.msra.mxu0 %v892
      %970 = vmatprep.subr.mxu0 %v895
      %971 = vmatpush1.msra.mxu0 %v894
      %972 = vmatprep.subr.mxu0 %v897
      %973 = vmatpush1.msra.mxu0 %v896
      %974 = vmatprep.subr.mxu0 %v899
      %975 = vmatpush1.msra.mxu0 %v898
      %976 = vmatprep.mubr.f32.mxu0 %v833
      %977 = vmatmul.mubr.f32.gmra.mrb[0].mxu0 %v832
      %v978 = vpop.f32.mrb[0].mxu0
      %v979 = vadd.f32 %v905, %v978
      %v980 = vpop.f32.mrb[0].mxu0
      %v981 = vadd.f32 %v909, %v980
      %982 = vmatprep.mubr.f32.mxu0 %v835
      %983 = vmatmul.mubr.f32.gmra.mrb[0].mxu0 %v834
      %v984 = vpop.f32.mrb[0].mxu0
      %v985 = vadd.f32 %v905, %v984
      %v986 = vpop.f32.mrb[0].mxu0
      %v987 = vadd.f32 %v909, %v986
      %988 = vdwg.mxu0
      %v989 = vtanh.pop %v979
      %v990 = vtanh.pop %v981
      %v991 = vtanh.pop %v985
      %v992 = vtanh.pop %v987
      %v993 = vld [vmem:[%s13] sm:$0xff]
      %v994 = vld [vmem:[%s13 + $0x8] sm:$0xff]
      %v995 = vld [vmem:[%s13 + $0x10] sm:$0xff]
      %v996 = vld [vmem:[%s13 + $0x18] sm:$0xff]
      %v997 = vld [vmem:[%s13 + $0x20] sm:$0xff]
      %v998 = vld [vmem:[%s13 + $0x28] sm:$0xff]
      %v999 = vld [vmem:[%s13 + $0x30] sm:$0xff]
      %v1000 = vld [vmem:[%s13 + $0x38] sm:$0xff]
      %v1001 = vld [vmem:[%s13 + $0x40] sm:$0xff]
      %v1002 = vld [vmem:[%s13 + $0x48] sm:$0xff]
      %v1003 = vld [vmem:[%s13 + $0x50] sm:$0xff]
      %v1004 = vld [vmem:[%s13 + $0x58] sm:$0xff]
      %v1005 = vld [vmem:[%s13 + $0x60] sm:$0xff]
      %v1006 = vld [vmem:[%s13 + $0x68] sm:$0xff]
      %v1007 = vld [vmem:[%s13 + $0x70] sm:$0xff]
      %v1008 = vld [vmem:[%s13 + $0x78] sm:$0xff]
      %v1009 = vld [vmem:[%s13 + $0x80] sm:$0xff]
      %v1010 = vld [vmem:[%s13 + $0x88] sm:$0xff]
      %v1011 = vld [vmem:[%s13 + $0x90] sm:$0xff]
      %v1012 = vld [vmem:[%s13 + $0x98] sm:$0xff]
      %v1013 = vld [vmem:[%s13 + $0xa0] sm:$0xff]
      %v1014 = vld [vmem:[%s13 + $0xa8] sm:$0xff]
      %v1015 = vld [vmem:[%s13 + $0xb0] sm:$0xff]
      %v1016 = vld [vmem:[%s13 + $0xb8] sm:$0xff]
      %v1017 = vld [vmem:[%s13 + $0xc0] sm:$0xff]
      %v1018 = vld [vmem:[%s13 + $0xc8] sm:$0xff]
      %v1019 = vld [vmem:[%s13 + $0xd0] sm:$0xff]
      %v1020 = vld [vmem:[%s13 + $0xd8] sm:$0xff]
      %v1021 = vld [vmem:[%s13 + $0xe0] sm:$0xff]
      %v1022 = vld [vmem:[%s13 + $0xe8] sm:$0xff]
      %v1023 = vld [vmem:[%s13 + $0xf0] sm:$0xff]
      %v1024 = vld [vmem:[%s13 + $0xf8] sm:$0xff]
      %v1025 = vld [vmem:[%s14] sm:$0x1]
      %v1027 = vlaneseq
      %v1028 = vshrl.u32 %v1027, 7
      %v1029 = vsub.s32 0, %v1028
      %v1030 = vrot.slane %v1025, %v1029
      %1032 = vmatprep.subr.mxu0 0.0
      %1033 = vmatpush1.msra.mxu0 %v993
      %1034 = vmatprep.subr.mxu0 0.0
      %1035 = vmatpush1.msra.mxu0 %v994
      %1036 = vmatprep.subr.mxu0 0.0
      %1037 = vmatpush1.msra.mxu0 %v995
      %1038 = vmatprep.subr.mxu0 0.0
      %1039 = vmatpush1.msra.mxu0 %v996
      %1040 = vmatprep.subr.mxu0 0.0
      %1041 = vmatpush1.msra.mxu0 %v997
      %1042 = vmatprep.subr.mxu0 0.0
      %1043 = vmatpush1.msra.mxu0 %v998
      %1044 = vmatprep.subr.mxu0 0.0
      %1045 = vmatpush1.msra.mxu0 %v999
      %1046 = vmatprep.subr.mxu0 0.0
      %1047 = vmatpush1.msra.mxu0 %v1000
      %1048 = vmatprep.subr.mxu0 0.0
      %1049 = vmatpush1.msra.mxu0 %v1001
      %1050 = vmatprep.subr.mxu0 0.0
      %1051 = vmatpush1.msra.mxu0 %v1002
      %1052 = vmatprep.subr.mxu0 0.0
      %1053 = vmatpush1.msra.mxu0 %v1003
      %1054 = vmatprep.subr.mxu0 0.0
      %1055 = vmatpush1.msra.mxu0 %v1004
      %1056 = vmatprep.subr.mxu0 0.0
      %1057 = vmatpush1.msra.mxu0 %v1005
      %1058 = vmatprep.subr.mxu0 0.0
      %1059 = vmatpush1.msra.mxu0 %v1006
      %1060 = vmatprep.subr.mxu0 0.0
      %1061 = vmatpush1.msra.mxu0 %v1007
      %1062 = vmatprep.subr.mxu0 0.0
      %1063 = vmatpush1.msra.mxu0 %v1008
      %1064 = vmatprep.subr.mxu0 0.0
      %1065 = vmatpush1.msra.mxu0 %v1009
      %1066 = vmatprep.subr.mxu0 0.0
      %1067 = vmatpush1.msra.mxu0 %v1010
      %1068 = vmatprep.subr.mxu0 0.0
      %1069 = vmatpush1.msra.mxu0 %v1011
      %1070 = vmatprep.subr.mxu0 0.0
      %1071 = vmatpush1.msra.mxu0 %v1012
      %1072 = vmatprep.subr.mxu0 0.0
      %1073 = vmatpush1.msra.mxu0 %v1013
      %1074 = vmatprep.subr.mxu0 0.0
      %1075 = vmatpush1.msra.mxu0 %v1014
      %1076 = vmatprep.subr.mxu0 0.0
      %1077 = vmatpush1.msra.mxu0 %v1015
      %1078 = vmatprep.subr.mxu0 0.0
      %1079 = vmatpush1.msra.mxu0 %v1016
      %1080 = vmatprep.subr.mxu0 0.0
      %1081 = vmatpush1.msra.mxu0 %v1017
      %1082 = vmatprep.subr.mxu0 0.0
      %1083 = vmatpush1.msra.mxu0 %v1018
      %1084 = vmatprep.subr.mxu0 0.0
      %1085 = vmatpush1.msra.mxu0 %v1019
      %1086 = vmatprep.subr.mxu0 0.0
      %1087 = vmatpush1.msra.mxu0 %v1020
      %1088 = vmatprep.subr.mxu0 0.0
      %1089 = vmatpush1.msra.mxu0 %v1021
      %1090 = vmatprep.subr.mxu0 0.0
      %1091 = vmatpush1.msra.mxu0 %v1022
      %1092 = vmatprep.subr.mxu0 0.0
      %1093 = vmatpush1.msra.mxu0 %v1023
      %1094 = vmatprep.subr.mxu0 0.0
      %1095 = vmatpush1.msra.mxu0 %v1024
      %1096 = vmatprep.mubr.f32.mxu0 %v990
      %1097 = vmatmul.mubr.f32.gmra.mrb[0].mxu0 %v989
      %v1098 = vpop.f32.mrb[0].mxu0
      %v1099 = vadd.f32 %v1030, %v1098
      %v1100 = vpop.f32.mrb[0].mxu0
      %1101 = vmatprep.mubr.f32.mxu0 %v992
      %1102 = vmatmul.mubr.f32.gmra.mrb[0].mxu0 %v991
      %v1103 = vpop.f32.mrb[0].mxu0
      %v1104 = vadd.f32 %v1030, %v1103
      %v1105 = vpop.f32.mrb[0].mxu0
      %1106 = vdwg.mxu0
      %1107 = vst [vmem:[%s559] sm:$0xff] %v1099
      %1108 = vst [vmem:[%s559 + $0x8] sm:$0xff] %v1104
      %v1109 = vld [vmem:[%s7] sm:$0x1]
      %v1111 = vlaneseq
      %v1112 = vshrl.u32 %v1111, 7
      %v1113 = vsub.s32 0, %v1112
      %v1114 = vrot.slane %v1109, %v1113
      %v1116 = vmul.f32 %v1099, %v1114
      %v1117 = vmul.f32 %v1104, %v1114
      %v1118 = vadd.f32 %v561, %v1116
      %v1119 = vadd.f32 %v562, %v1117
      %v1120 = vld [vmem:[%s6] sm:$0x1]
      %v1122 = vlaneseq
      %v1123 = vshrl.u32 %v1122, 7
      %v1124 = vsub.s32 0, %v1123
      %v1125 = vrot.slane %v1120, %v1124
      %v1127 = vadd.f32 %v1118, %v1125
      %v1128 = vadd.f32 %v1119, %v1125
      %1129 = vst [vmem:[%s553] sm:$0xff] %v1127
      %1130 = vst [vmem:[%s553 + $0x8] sm:$0xff] %v1128
      %s1131 = smul.u32 2, %s28
      %p1132 = scmp.lt.s32.totalorder %s1131, 7
      %s1133 = scalar_select %p1132, %s1131, 7
      %s1134 = smul.addr %s1133, 8
      %s1135 = scalar_lea.vmem %s15, %s1134
      %s1136 = smul.u32 2, %s28
      %p1137 = scmp.lt.s32.totalorder %s1136, 7
      %s1138 = scalar_select %p1137, %s1136, 7
      %s1139 = smul.addr %s1138, 8
      %s1140 = scalar_lea.vmem %s16, %s1139
      // Predicated region
      $region81: #{ff_model_forward.1} parent=79 // pred_check
        %p1141 = pneg %p371
      $region82: #{ff_model_forward.1} parent=79 // pred_check_branch
        %1143 = sbr.rel (%p1141) target = $region84
      $region83: #{ff_model_forward.1} parent=79 // pred_region
        %s1144 = smul.u32 2, %s28
      $region84: #{ff_model_forward.1} parent=79 // pred_fallthru
        _
      // Predicated region
      $region85: #{ff_model_forward.1} parent=79 // pred_check
        %p1145 = pneg %p397
      $region86: #{ff_model_forward.1} parent=79 // pred_check_branch
        %1147 = sbr.rel (%p1145) target = $region88
      $region87: #{ff_model_forward.1} parent=79 // pred_region
        %s1148 = smul.u32 2, %s28
      $region88: #{ff_model_forward.1} parent=79 // pred_fallthru
        _
    $region80: #{ff_model_forward.1} parent=5 // pred_fallthru
      _
    %p1149 = scmp.le.s32.totalorder 2, %s23
    // Predicated region
    $region89: #{ff_model_forward.1} parent=5 // pred_check
      %p1150 = pneg %p1149
    $region90: #{ff_model_forward.1} parent=5 // pred_check_branch
      %1152 = sbr.rel (%p1150) target = $region92
    $region91: #{ff_model_forward.1} parent=5 // pred_region
      %s1153 = ssub.s32 %s23, 2
      // Predicated region
      $region93: #{ff_model_forward.1} parent=91 // pred_check
        %p1154 = pneg %p377
      $region94: #{ff_model_forward.1} parent=91 // pred_check_branch
        %1156 = sbr.rel (%p1154) target = $region96
      $region95: #{ff_model_forward.1} parent=91 // pred_region
        %s1157 = smul.u32 2, %s29
        %p1158 = scmp.lt.s32.totalorder %s1157, 7
        %s1159 = scalar_select %p1158, %s1157, 7
        %s1160 = smul.addr %s1159, 8
        %s1161 = scalar_lea.vmem %s15, %s1160
      $region96: #{ff_model_forward.1} parent=91 // pred_fallthru
        _
      // Predicated region
      $region97: #{ff_model_forward.1} parent=91 // pred_check
        %p1162 = pneg %p403
      $region98: #{ff_model_forward.1} parent=91 // pred_check_branch
        %1164 = sbr.rel (%p1162) target = $region100
      $region99: #{ff_model_forward.1} parent=91 // pred_region
        %s1165 = smul.u32 2, %s29
        %p1166 = scmp.lt.s32.totalorder %s1165, 7
        %s1167 = scalar_select %p1166, %s1165, 7
        %s1168 = smul.addr %s1167, 8
        %s1169 = scalar_lea.vmem %s16, %s1168
      $region100: #{ff_model_forward.1} parent=91 // pred_fallthru
        _
    $region92: #{ff_model_forward.1} parent=5 // pred_fallthru
      _
  $region6: #{ff_model_forward.1} parent=0 // loop_footer
    %s27 = sadd.s32 1, %s23
  $region7: #{ff_model_forward.1} parent=0 // loop_footer_branch
    %22 = sbr.rel target = $region3
  $region8: #{ff_model_forward.1} parent=0 // loop_exit
    _

</llo_original>
